<compile_context>
chip_gen: v7x
topology: tpu7x:2x2x1
jax: 0.10.0
libtpu: 0.0.40
codegen_flags: <defaults>
</compile_context>

<pallas_src>
import functools

import jax
import jax.numpy as jnp
from jax import lax
from jax.experimental import pallas as pl
from jax.experimental.pallas import tpu as pltpu


def _round_up(v, m):
    return ((v + m - 1) // m) * m


def _block_kernel(x_ref, w1_ref, b1_ref, w2_ref, b2_ref, o_ref,
                  xf_ref, patches_ref, *, H, W, C, K, pad, nb, xf_off):
    """One grid step = `nb` images, NCHW layout, flattened H*W axis on lanes."""
    HW = H * W
    padl = pad * (W + 1)   # halo lanes actually read on each side of the interior

    # Lane-column (x coordinate) of every flattened spatial position.  Used to mask
    # the left/right zero-padding columns that the flattened-shift im2col would
    # otherwise wrap into the neighbouring row.  Computed once, hoisted out of loops.
    col = lax.broadcasted_iota(jnp.int32, (C, HW), 1) % W

    for img in range(nb):
        # Zero only the halo strips the shifted-slab reads touch (top/bottom padding
        # rows).  NOT gated on program_id: scratch is per-core and grid steps are
        # sharded across cores under megacore, so every step re-zeros its own halo.
        if padl > 0:
            xf_ref[:, xf_off - padl:xf_off] = jnp.zeros((C, padl), jnp.float32)
            xf_ref[:, xf_off + HW:xf_off + HW + padl] = (
                jnp.zeros((C, padl), jnp.float32))
        # Interior: image `img` flattened to (C, H*W) -- lane-dense, lane-aligned.
        xf_ref[:, xf_off:xf_off + HW] = x_ref[img]

        # Transposed im2col: patchesT[(dy*K+dx)*C + c_in, hw] = xpad[c_in, y+dy, x+dx]
        # Every store is full-lane width (HW, multiple of 128) at a sublane offset
        # that is a multiple of C -- no masked partial stores.
        for dy in range(K):
            for dx in range(K):
                j = dy * K + dx
                s = xf_off - padl + dy * W + dx
                slab = xf_ref[:, s:s + HW]
                # Column mask for left/right zero padding (row padding comes from the
                # zeroed halo strips).  f32 select -- safe on v5e's f32-only VPU.
                if dx < pad:
                    slab = jnp.where(col >= pad - dx, slab, 0.0)
                elif dx > pad:
                    slab = jnp.where(col < W + pad - dx, slab, 0.0)
                patches_ref[j * C:(j + 1) * C, img * HW:(img + 1) * HW] = (
                    slab.astype(patches_ref.dtype))

    # Conv3x3 (BN1 scale pre-folded into weight rows) as one deep MXU matmul:
    # (C, K*K*C) @ (K*K*C, nb*H*W) -> lane-dense (C, nb*H*W), f32 accumulation.
    y = jnp.dot(w1_ref[...], patches_ref[...], preferred_element_type=jnp.float32)
    y = jnp.maximum(y + b1_ref[...], 0.0)                    # bias + ReLU, f32 VPU

    # Conv1x1 (BN2 scale pre-folded) -> bias.  bf16 only as MXU operand dtype.
    z = jnp.dot(w2_ref[...], y.astype(w2_ref.dtype),
                preferred_element_type=jnp.float32)
    z = z + b2_ref[...]

    # Residual add (DropPath == identity in eval); lane-dense f32 stores.
    for img in range(nb):
        o_ref[img] = x_ref[img] + z[:, img * HW:(img + 1) * HW]


def block_forward_flat(x_flat, w1t, b1_col, w2t, b2_col, *, H, W, K, pad):
    """x_flat: (N, C, H*W) f32 (NCHW with spatial flattened -- a free reshape)."""
    N, C, HW = x_flat.shape

    # Images per grid step: amortize per-step overhead, keep >= 2 steps (v7x has 2
    # TensorCores sharing the parallel axis), keep the im2col scratch modest.
    nb = 1
    budget = 8 * 1024 * 1024
    for cand in range(max(1, N // 2), 0, -1):
        if N % cand == 0 and K * K * C * cand * HW * 2 <= budget:
            nb = cand
            break
    grid = (N // nb,)

    padl = pad * (W + 1)
    xf_off = _round_up(padl, 128) if padl > 0 else 0   # lane-aligned interior
    xf_len = xf_off + _round_up(HW + padl, 128)

    kernel = functools.partial(_block_kernel, H=H, W=W, C=C, K=K, pad=pad,
                               nb=nb, xf_off=xf_off)

    flops = 2 * N * HW * C * C * (K * K + 1)
    bytes_accessed = (N * HW * C * 4 * 2              # activations in + out (f32)
                      + (K * K * C * C + C * C) * 2   # folded bf16 weights
                      + 2 * C * 4)                    # folded biases

    # NOTE: output kept f32 to match the PyTorch module exactly; switching
    # out_shape/dtype to bf16 would halve writeback bytes (review item 7).
    return pl.pallas_call(
        kernel,
        out_shape=jax.ShapeDtypeStruct((N, C, HW), jnp.float32),
        grid_spec=pltpu.PrefetchScalarGridSpec(
            num_scalar_prefetch=0,
            grid=grid,
            in_specs=[
                pl.BlockSpec((nb, C, HW), lambda n: (n, 0, 0)),       # activations
                pl.BlockSpec((C, K * K * C), lambda n: (0, 0)),       # folded 3x3 W^T
                pl.BlockSpec((C, 1), lambda n: (0, 0)),               # folded bias 1
                pl.BlockSpec((C, C), lambda n: (0, 0)),               # folded 1x1 W^T
                pl.BlockSpec((C, 1), lambda n: (0, 0)),               # folded bias 2
            ],
            out_specs=pl.BlockSpec((nb, C, HW), lambda n: (n, 0, 0)),
            scratch_shapes=[
                pltpu.VMEM((C, xf_len), jnp.float32),                 # padded rows
                pltpu.VMEM((K * K * C, nb * HW), jnp.bfloat16),       # im2col^T
            ],
        ),
        compiler_params=pltpu.CompilerParams(
            dimension_semantics=("parallel",),
            vmem_limit_bytes=64 * 1024 * 1024,
        ),
        cost_estimate=pl.CostEstimate(
            flops=flops, transcendentals=0, bytes_accessed=bytes_accessed),
    )(x_flat, w1t, b1_col, w2t, b2_col)


def init_params(key, dim, k=3):
    """Deterministic synthetic parameters matching the PyTorch module shapes."""
    ks = jax.random.split(key, 12)
    p = {}
    # Conv2d(dim, dim, 3, 1, 1): weight (out, in, kh, kw), bias (out,)
    p["w1"] = 0.05 * jax.random.normal(ks[0], (dim, dim, k, k), jnp.float32)
    p["cb1"] = 0.01 * jax.random.normal(ks[1], (dim,), jnp.float32)
    # BatchNorm2d(dim) #1
    p["g1"] = 1.0 + 0.1 * jax.random.normal(ks[2], (dim,), jnp.float32)
    p["be1"] = 0.1 * jax.random.normal(ks[3], (dim,), jnp.float32)
    p["m1"] = 0.05 * jax.random.normal(ks[4], (dim,), jnp.float32)
    p["v1"] = 1.0 + 0.1 * jnp.abs(jax.random.normal(ks[5], (dim,), jnp.float32))
    # Conv2d(dim, dim, 1, 1, 0)
    p["w2"] = 0.05 * jax.random.normal(ks[6], (dim, dim, 1, 1), jnp.float32)
    p["cb2"] = 0.01 * jax.random.normal(ks[7], (dim,), jnp.float32)
    # BatchNorm2d(dim) #2
    p["g2"] = 1.0 + 0.1 * jax.random.normal(ks[8], (dim,), jnp.float32)
    p["be2"] = 0.1 * jax.random.normal(ks[9], (dim,), jnp.float32)
    p["m2"] = 0.05 * jax.random.normal(ks[10], (dim,), jnp.float32)
    p["v2"] = 1.0 + 0.1 * jnp.abs(jax.random.normal(ks[11], (dim,), jnp.float32))
    return p


@jax.jit
def block_forward_nchw(x_nchw, p):
    """NCHW in/out (PyTorch convention). Folds BN running stats + conv biases,
    builds transposed-matmul weight layouts, and calls the Pallas kernel.  No
    layout transposes: only free (N,C,H,W)<->(N,C,H*W) reshapes."""
    eps = 1e-5
    C = p["w1"].shape[0]
    K = p["w1"].shape[2]
    pad = (K - 1) // 2

    # Fold BN running stats + conv biases into per-output-channel scale/bias.
    s1 = p["g1"] / jnp.sqrt(p["v1"] + eps)
    b1 = p["be1"] + s1 * (p["cb1"] - p["m1"])
    s2 = p["g2"] / jnp.sqrt(p["v2"] + eps)
    b2 = p["be2"] + s2 * (p["cb2"] - p["m2"])

    # Transposed-matmul layouts: rows = output channels (so the BN scale folds per
    # row), columns = (dy*K + dx)*C + c_in, matching the kernel's patchesT rows.
    w1t = (jnp.transpose(p["w1"], (0, 2, 3, 1)).reshape(C, K * K * C)
           * s1[:, None]).astype(jnp.bfloat16)
    w2t = (p["w2"][:, :, 0, 0] * s2[:, None]).astype(jnp.bfloat16)

    N, _, H, W = x_nchw.shape
    x_flat = x_nchw.astype(jnp.float32).reshape(N, C, H * W)   # free reshape
    out = block_forward_flat(x_flat, w1t, b1[:, None], w2t, b2[:, None],
                             H=H, W=W, K=K, pad=pad)
    return out.reshape(N, C, H, W)


def block_forward_ref(x_nchw, p, *, eps=1e-5):
    """Pure-JAX f32 reference mirroring PyTorch's NCHW forward (eval mode)."""
    dn = ("NCHW", "OIHW", "NCHW")
    y = lax.conv_general_dilated(x_nchw, p["w1"], (1, 1), ((1, 1), (1, 1)),
                                 dimension_numbers=dn)
    y = y + p["cb1"][None, :, None, None]
    y = p["g1"][None, :, None, None] * (y - p["m1"][None, :, None, None]) \
        / jnp.sqrt(p["v1"] + eps)[None, :, None, None] + p["be1"][None, :, None, None]
    y = jnp.maximum(y, 0.0)
    z = lax.conv_general_dilated(y, p["w2"], (1, 1), ((0, 0), (0, 0)),
                                 dimension_numbers=dn)
    z = z + p["cb2"][None, :, None, None]
    z = p["g2"][None, :, None, None] * (z - p["m2"][None, :, None, None]) \
        / jnp.sqrt(p["v2"] + eps)[None, :, None, None] + p["be2"][None, :, None, None]
    return x_nchw + z  # DropPath identity in eval


if __name__ == "__main__":
    N, C, H, W = 2, 32, 16, 16
    key = jax.random.PRNGKey(0)
    kx, kp = jax.random.split(key)
    x = jax.random.normal(kx, (N, C, H, W), jnp.float32)
    params = init_params(kp, C, k=3)

    out = jax.block_until_ready(block_forward_nchw(x, params))
    ref = jax.block_until_ready(block_forward_ref(x, params))

    assert out.shape == (N, C, H, W)
    # Kernel matmuls use bf16 operands (f32 accumulation); tolerance loosened
    # accordingly vs the f32 reference.
    max_err = float(jnp.max(jnp.abs(out - ref)))
    assert jnp.allclose(out, ref, atol=3e-2, rtol=3e-2), f"max err {max_err}"
    print("KERNEL_OK")
</pallas_src>

<mosaic_0001>
module attributes {stable_mosaic.version = 11 : i64} {
  func.func @_block_kernel(%arg0: i32, %arg1: memref<1x32x256xf32, #tpu.memory_space<vmem>>, %arg2: memref<32x288xbf16, #tpu.memory_space<vmem>>, %arg3: memref<32x1xf32, #tpu.memory_space<vmem>>, %arg4: memref<32x32xbf16, #tpu.memory_space<vmem>>, %arg5: memref<32x1xf32, #tpu.memory_space<vmem>>, %arg6: memref<1x32x256xf32, #tpu.memory_space<vmem>>, %arg7: memref<32x512xf32, #tpu.memory_space<vmem>>, %arg8: memref<288x256xbf16, #tpu.memory_space<vmem>>) attributes {dimension_semantics = [#tpu.dimension_semantics<parallel>], iteration_bounds = array<i64: 2>, scalar_prefetch = 0 : i64, scratch_operands = 2 : i64, tpu.core_type = #tpu.core_type<tc>, window_params = [{transform_indices = @transform_0, window_bounds = array<i64: 1, 32, 256>}, {pipeline_mode = #tpu.pipeline_mode<synchronous>, transform_indices = @transform_1, window_bounds = array<i64: 32, 288>}, {pipeline_mode = #tpu.pipeline_mode<synchronous>, transform_indices = @transform_2, window_bounds = array<i64: 32, 1>}, {pipeline_mode = #tpu.pipeline_mode<synchronous>, transform_indices = @transform_3, window_bounds = array<i64: 32, 32>}, {pipeline_mode = #tpu.pipeline_mode<synchronous>, transform_indices = @transform_4, window_bounds = array<i64: 32, 1>}, {transform_indices = @transform_5, window_bounds = array<i64: 1, 32, 256>}]} {
    %0 = tpu.iota {dimensions = array<i32: 1>} : vector<32x256xi32>
    %c16_i32 = arith.constant 16 : i32
    %c0_i32 = arith.constant 0 : i32
    %1 = arith.cmpi eq, %c16_i32, %c0_i32 : i32
    %c1_i32 = arith.constant 1 : i32
    %2 = arith.select %1, %c1_i32, %c16_i32 : i32
    %3 = vector.broadcast %2 : i32 to vector<32x256xi32>
    %4 = arith.remsi %0, %3 : vector<32x256xi32>
    %c0_i32_0 = arith.constant 0 : i32
    %5 = vector.broadcast %c0_i32_0 : i32 to vector<32x256xi32>
    %6 = arith.cmpi ne, %4, %5 : vector<32x256xi32>
    %c0_i32_1 = arith.constant 0 : i32
    %7 = vector.broadcast %c0_i32_1 : i32 to vector<32x256xi32>
    %8 = arith.cmpi slt, %4, %7 : vector<32x256xi32>
    %c0_i32_2 = arith.constant 0 : i32
    %9 = arith.cmpi slt, %2, %c0_i32_2 : i32
    %10 = vector.broadcast %9 : i1 to vector<32x256xi1>
    %11 = vector.broadcast %10 : vector<32x256xi1> to vector<32x256xi1>
    %12 = arith.xori %8, %11 : vector<32x256xi1>
    %13 = arith.andi %12, %6 : vector<32x256xi1>
    %14 = vector.broadcast %2 : i32 to vector<32x256xi32>
    %15 = arith.addi %4, %14 : vector<32x256xi32>
    %16 = arith.select %13, %15, %4 : vector<32x256xi1>, vector<32x256xi32>
    %cst = arith.constant 0.000000e+00 : f32
    %17 = vector.broadcast %cst : f32 to vector<32x17xf32>
    %c0 = arith.constant 0 : index
    %c111 = arith.constant 111 : index
    %18 = vector.load %arg7[%c0, %c111] : memref<32x512xf32, #tpu.memory_space<vmem>>, vector<32x17xf32>
    tpu.vector_store %arg7[%c0, %c111], %17 {strides = array<i32>} : memref<32x512xf32, #tpu.memory_space<vmem>>, vector<32x17xf32>,
    %cst_3 = arith.constant 0.000000e+00 : f32
    %19 = vector.broadcast %cst_3 : f32 to vector<32x17xf32>
    %c0_4 = arith.constant 0 : index
    %c384 = arith.constant 384 : index
    %20 = vector.load %arg7[%c0_4, %c384] : memref<32x512xf32, #tpu.memory_space<vmem>>, vector<32x17xf32>
    tpu.vector_store %arg7[%c0_4, %c384], %19 {strides = array<i32>} : memref<32x512xf32, #tpu.memory_space<vmem>>, vector<32x17xf32>,
    %c0_5 = arith.constant 0 : index
    %c0_6 = arith.constant 0 : index
    %c0_7 = arith.constant 0 : index
    %21 = vector.load %arg1[%c0_5, %c0_6, %c0_7] : memref<1x32x256xf32, #tpu.memory_space<vmem>>, vector<1x32x256xf32>
    %22 = vector.shape_cast %21 : vector<1x32x256xf32> to vector<32x256xf32>
    %c0_8 = arith.constant 0 : index
    %c128 = arith.constant 128 : index
    %23 = vector.load %arg7[%c0_8, %c128] : memref<32x512xf32, #tpu.memory_space<vmem>>, vector<32x256xf32>
    tpu.vector_store %arg7[%c0_8, %c128], %22 {strides = array<i32>} : memref<32x512xf32, #tpu.memory_space<vmem>>, vector<32x256xf32>,
    %c0_9 = arith.constant 0 : index
    %c111_10 = arith.constant 111 : index
    %24 = vector.load %arg7[%c0_9, %c111_10] : memref<32x512xf32, #tpu.memory_space<vmem>>, vector<32x256xf32>
    %c1_i32_11 = arith.constant 1 : i32
    %25 = vector.broadcast %c1_i32_11 : i32 to vector<32x256xi32>
    %26 = arith.cmpi sge, %16, %25 : vector<32x256xi32>
    %cst_12 = arith.constant 0.000000e+00 : f32
    %27 = vector.broadcast %cst_12 : f32 to vector<32x256xf32>
    %28 = arith.select %26, %24, %27 : vector<32x256xi1>, vector<32x256xf32>
    %29 = arith.truncf %28 : vector<32x256xf32> to vector<32x256xbf16>
    %c0_13 = arith.constant 0 : index
    %c0_14 = arith.constant 0 : index
    %30 = vector.load %arg8[%c0_13, %c0_14] : memref<288x256xbf16, #tpu.memory_space<vmem>>, vector<32x256xbf16>
    tpu.vector_store %arg8[%c0_13, %c0_14], %29 {strides = array<i32>} : memref<288x256xbf16, #tpu.memory_space<vmem>>, vector<32x256xbf16>,
    %c0_15 = arith.constant 0 : index
    %c112 = arith.constant 112 : index
    %31 = vector.load %arg7[%c0_15, %c112] : memref<32x512xf32, #tpu.memory_space<vmem>>, vector<32x256xf32>
    %32 = arith.truncf %31 : vector<32x256xf32> to vector<32x256xbf16>
    %c32 = arith.constant 32 : index
    %c0_16 = arith.constant 0 : index
    %33 = vector.load %arg8[%c32, %c0_16] : memref<288x256xbf16, #tpu.memory_space<vmem>>, vector<32x256xbf16>
    tpu.vector_store %arg8[%c32, %c0_16], %32 {strides = array<i32>} : memref<288x256xbf16, #tpu.memory_space<vmem>>, vector<32x256xbf16>,
    %c0_17 = arith.constant 0 : index
    %c113 = arith.constant 113 : index
    %34 = vector.load %arg7[%c0_17, %c113] : memref<32x512xf32, #tpu.memory_space<vmem>>, vector<32x256xf32>
    %c15_i32 = arith.constant 15 : i32
    %35 = vector.broadcast %c15_i32 : i32 to vector<32x256xi32>
    %36 = arith.cmpi slt, %16, %35 : vector<32x256xi32>
    %cst_18 = arith.constant 0.000000e+00 : f32
    %37 = vector.broadcast %cst_18 : f32 to vector<32x256xf32>
    %38 = arith.select %36, %34, %37 : vector<32x256xi1>, vector<32x256xf32>
    %39 = arith.truncf %38 : vector<32x256xf32> to vector<32x256xbf16>
    %c64 = arith.constant 64 : index
    %c0_19 = arith.constant 0 : index
    %40 = vector.load %arg8[%c64, %c0_19] : memref<288x256xbf16, #tpu.memory_space<vmem>>, vector<32x256xbf16>
    tpu.vector_store %arg8[%c64, %c0_19], %39 {strides = array<i32>} : memref<288x256xbf16, #tpu.memory_space<vmem>>, vector<32x256xbf16>,
    %c0_20 = arith.constant 0 : index
    %c127 = arith.constant 127 : index
    %41 = vector.load %arg7[%c0_20, %c127] : memref<32x512xf32, #tpu.memory_space<vmem>>, vector<32x256xf32>
    %c1_i32_21 = arith.constant 1 : i32
    %42 = vector.broadcast %c1_i32_21 : i32 to vector<32x256xi32>
    %43 = arith.cmpi sge, %16, %42 : vector<32x256xi32>
    %cst_22 = arith.constant 0.000000e+00 : f32
    %44 = vector.broadcast %cst_22 : f32 to vector<32x256xf32>
    %45 = arith.select %43, %41, %44 : vector<32x256xi1>, vector<32x256xf32>
    %46 = arith.truncf %45 : vector<32x256xf32> to vector<32x256xbf16>
    %c96 = arith.constant 96 : index
    %c0_23 = arith.constant 0 : index
    %47 = vector.load %arg8[%c96, %c0_23] : memref<288x256xbf16, #tpu.memory_space<vmem>>, vector<32x256xbf16>
    tpu.vector_store %arg8[%c96, %c0_23], %46 {strides = array<i32>} : memref<288x256xbf16, #tpu.memory_space<vmem>>, vector<32x256xbf16>,
    %c0_24 = arith.constant 0 : index
    %c128_25 = arith.constant 128 : index
    %48 = vector.load %arg7[%c0_24, %c128_25] : memref<32x512xf32, #tpu.memory_space<vmem>>, vector<32x256xf32>
    %49 = arith.truncf %48 : vector<32x256xf32> to vector<32x256xbf16>
    %c128_26 = arith.constant 128 : index
    %c0_27 = arith.constant 0 : index
    %50 = vector.load %arg8[%c128_26, %c0_27] : memref<288x256xbf16, #tpu.memory_space<vmem>>, vector<32x256xbf16>
    tpu.vector_store %arg8[%c128_26, %c0_27], %49 {strides = array<i32>} : memref<288x256xbf16, #tpu.memory_space<vmem>>, vector<32x256xbf16>,
    %c0_28 = arith.constant 0 : index
    %c129 = arith.constant 129 : index
    %51 = vector.load %arg7[%c0_28, %c129] : memref<32x512xf32, #tpu.memory_space<vmem>>, vector<32x256xf32>
    %c15_i32_29 = arith.constant 15 : i32
    %52 = vector.broadcast %c15_i32_29 : i32 to vector<32x256xi32>
    %53 = arith.cmpi slt, %16, %52 : vector<32x256xi32>
    %cst_30 = arith.constant 0.000000e+00 : f32
    %54 = vector.broadcast %cst_30 : f32 to vector<32x256xf32>
    %55 = arith.select %53, %51, %54 : vector<32x256xi1>, vector<32x256xf32>
    %56 = arith.truncf %55 : vector<32x256xf32> to vector<32x256xbf16>
    %c160 = arith.constant 160 : index
    %c0_31 = arith.constant 0 : index
    %57 = vector.load %arg8[%c160, %c0_31] : memref<288x256xbf16, #tpu.memory_space<vmem>>, vector<32x256xbf16>
    tpu.vector_store %arg8[%c160, %c0_31], %56 {strides = array<i32>} : memref<288x256xbf16, #tpu.memory_space<vmem>>, vector<32x256xbf16>,
    %c0_32 = arith.constant 0 : index
    %c143 = arith.constant 143 : index
    %58 = vector.load %arg7[%c0_32, %c143] : memref<32x512xf32, #tpu.memory_space<vmem>>, vector<32x256xf32>
    %c1_i32_33 = arith.constant 1 : i32
    %59 = vector.broadcast %c1_i32_33 : i32 to vector<32x256xi32>
    %60 = arith.cmpi sge, %16, %59 : vector<32x256xi32>
    %cst_34 = arith.constant 0.000000e+00 : f32
    %61 = vector.broadcast %cst_34 : f32 to vector<32x256xf32>
    %62 = arith.select %60, %58, %61 : vector<32x256xi1>, vector<32x256xf32>
    %63 = arith.truncf %62 : vector<32x256xf32> to vector<32x256xbf16>
    %c192 = arith.constant 192 : index
    %c0_35 = arith.constant 0 : index
    %64 = vector.load %arg8[%c192, %c0_35] : memref<288x256xbf16, #tpu.memory_space<vmem>>, vector<32x256xbf16>
    tpu.vector_store %arg8[%c192, %c0_35], %63 {strides = array<i32>} : memref<288x256xbf16, #tpu.memory_space<vmem>>, vector<32x256xbf16>,
    %c0_36 = arith.constant 0 : index
    %c144 = arith.constant 144 : index
    %65 = vector.load %arg7[%c0_36, %c144] : memref<32x512xf32, #tpu.memory_space<vmem>>, vector<32x256xf32>
    %66 = arith.truncf %65 : vector<32x256xf32> to vector<32x256xbf16>
    %c224 = arith.constant 224 : index
    %c0_37 = arith.constant 0 : index
    %67 = vector.load %arg8[%c224, %c0_37] : memref<288x256xbf16, #tpu.memory_space<vmem>>, vector<32x256xbf16>
    tpu.vector_store %arg8[%c224, %c0_37], %66 {strides = array<i32>} : memref<288x256xbf16, #tpu.memory_space<vmem>>, vector<32x256xbf16>,
    %c0_38 = arith.constant 0 : index
    %c145 = arith.constant 145 : index
    %68 = vector.load %arg7[%c0_38, %c145] : memref<32x512xf32, #tpu.memory_space<vmem>>, vector<32x256xf32>
    %c15_i32_39 = arith.constant 15 : i32
    %69 = vector.broadcast %c15_i32_39 : i32 to vector<32x256xi32>
    %70 = arith.cmpi slt, %16, %69 : vector<32x256xi32>
    %cst_40 = arith.constant 0.000000e+00 : f32
    %71 = vector.broadcast %cst_40 : f32 to vector<32x256xf32>
    %72 = arith.select %70, %68, %71 : vector<32x256xi1>, vector<32x256xf32>
    %73 = arith.truncf %72 : vector<32x256xf32> to vector<32x256xbf16>
    %c256 = arith.constant 256 : index
    %c0_41 = arith.constant 0 : index
    %74 = vector.load %arg8[%c256, %c0_41] : memref<288x256xbf16, #tpu.memory_space<vmem>>, vector<32x256xbf16>
    tpu.vector_store %arg8[%c256, %c0_41], %73 {strides = array<i32>} : memref<288x256xbf16, #tpu.memory_space<vmem>>, vector<32x256xbf16>,
    %c0_42 = arith.constant 0 : index
    %c0_43 = arith.constant 0 : index
    %75 = vector.load %arg2[%c0_42, %c0_43] : memref<32x288xbf16, #tpu.memory_space<vmem>>, vector<32x288xbf16>
    %c0_44 = arith.constant 0 : index
    %c0_45 = arith.constant 0 : index
    %76 = vector.load %arg8[%c0_44, %c0_45] : memref<288x256xbf16, #tpu.memory_space<vmem>>, vector<288x256xbf16>
    %cst_46 = arith.constant dense<0.000000e+00> : vector<32x256xf32>
    %77 = tpu.matmul %75, %76, %cst_46 {dimension_numbers = #tpu.dot_dimension_numbers<[1], [0], [0], [1], [0, 0, 1, 1], [], []>} : vector<32x288xbf16>, vector<288x256xbf16>, vector<32x256xf32> -> vector<32x256xf32>
    %c0_47 = arith.constant 0 : index
    %c0_48 = arith.constant 0 : index
    %78 = vector.load %arg3[%c0_47, %c0_48] : memref<32x1xf32, #tpu.memory_space<vmem>>, vector<32x1xf32>
    %79 = vector.broadcast %78 : vector<32x1xf32> to vector<32x256xf32>
    %80 = arith.addf %77, %79 : vector<32x256xf32>
    %cst_49 = arith.constant 0.000000e+00 : f32
    %81 = vector.broadcast %cst_49 : f32 to vector<32x256xf32>
    %82 = arith.maximumf %80, %81 : vector<32x256xf32>
    %c0_50 = arith.constant 0 : index
    %c0_51 = arith.constant 0 : index
    %83 = vector.load %arg4[%c0_50, %c0_51] : memref<32x32xbf16, #tpu.memory_space<vmem>>, vector<32x32xbf16>
    %84 = arith.truncf %82 : vector<32x256xf32> to vector<32x256xbf16>
    %cst_52 = arith.constant dense<0.000000e+00> : vector<32x256xf32>
    %85 = tpu.matmul %83, %84, %cst_52 {dimension_numbers = #tpu.dot_dimension_numbers<[1], [0], [0], [1], [0, 0, 1, 1], [], []>} : vector<32x32xbf16>, vector<32x256xbf16>, vector<32x256xf32> -> vector<32x256xf32>
    %c0_53 = arith.constant 0 : index
    %c0_54 = arith.constant 0 : index
    %86 = vector.load %arg5[%c0_53, %c0_54] : memref<32x1xf32, #tpu.memory_space<vmem>>, vector<32x1xf32>
    %87 = vector.broadcast %86 : vector<32x1xf32> to vector<32x256xf32>
    %88 = arith.addf %85, %87 : vector<32x256xf32>
    %c0_55 = arith.constant 0 : index
    %c0_56 = arith.constant 0 : index
    %c0_57 = arith.constant 0 : index
    %89 = vector.load %arg1[%c0_55, %c0_56, %c0_57] : memref<1x32x256xf32, #tpu.memory_space<vmem>>, vector<1x32x256xf32>
    %90 = vector.shape_cast %89 : vector<1x32x256xf32> to vector<32x256xf32>
    %91 = arith.addf %90, %88 : vector<32x256xf32>
    %c0_58 = arith.constant 0 : index
    %c0_59 = arith.constant 0 : index
    %c0_60 = arith.constant 0 : index
    %92 = vector.load %arg6[%c0_58, %c0_59, %c0_60] : memref<1x32x256xf32, #tpu.memory_space<vmem>>, vector<1x32x256xf32>
    %93 = vector.shape_cast %92 : vector<1x32x256xf32> to vector<32x256xf32>
    %94 = vector.shape_cast %91 : vector<32x256xf32> to vector<1x32x256xf32>
    tpu.vector_store %arg6[%c0_58, %c0_59, %c0_60], %94 {strides = array<i32>} : memref<1x32x256xf32, #tpu.memory_space<vmem>>, vector<1x32x256xf32>,
    return
  }
  func.func @transform_0(%arg0: i32) -> (i32, i32, i32) {
    %c0_i32 = arith.constant 0 : i32
    %c0_i32_0 = arith.constant 0 : i32
    %c0_i32_1 = arith.constant 0 : i32
    return %arg0, %c0_i32, %c0_i32_0 : i32, i32, i32
  }
  func.func @transform_1(%arg0: i32) -> (i32, i32) {
    %c0_i32 = arith.constant 0 : i32
    %c0_i32_0 = arith.constant 0 : i32
    %c0_i32_1 = arith.constant 0 : i32
    return %c0_i32, %c0_i32_0 : i32, i32
  }
  func.func @transform_2(%arg0: i32) -> (i32, i32) {
    %c0_i32 = arith.constant 0 : i32
    %c0_i32_0 = arith.constant 0 : i32
    %c0_i32_1 = arith.constant 0 : i32
    return %c0_i32, %c0_i32_0 : i32, i32
  }
  func.func @transform_3(%arg0: i32) -> (i32, i32) {
    %c0_i32 = arith.constant 0 : i32
    %c0_i32_0 = arith.constant 0 : i32
    %c0_i32_1 = arith.constant 0 : i32
    return %c0_i32, %c0_i32_0 : i32, i32
  }
  func.func @transform_4(%arg0: i32) -> (i32, i32) {
    %c0_i32 = arith.constant 0 : i32
    %c0_i32_0 = arith.constant 0 : i32
    %c0_i32_1 = arith.constant 0 : i32
    return %c0_i32, %c0_i32_0 : i32, i32
  }
  func.func @transform_5(%arg0: i32) -> (i32, i32, i32) {
    %c0_i32 = arith.constant 0 : i32
    %c0_i32_0 = arith.constant 0 : i32
    %c0_i32_1 = arith.constant 0 : i32
    return %arg0, %c0_i32, %c0_i32_0 : i32, i32, i32
  }
}

</mosaic_0001>

<llo_original>
// kernel: block_forward_nchw.1
$region0: #{block_forward_nchw.1}
  #allocation0 [shape = 'u32[]', space=smem, size = 0x4, offset = 0x4, fixed_abs, tag = 'smem constant byte address 0x4 - core index']
  #allocation1 [shape = 'u32[144,128]{1,0:T(1,128)}', space=vmem, size = 0x12000, scoped, tag = 'internal scratch']
  #allocation2 [shape = 'f32[32,512]{1,0:T(8,128)}', space=vmem, size = 0x10000, scoped, tag = 'scratch operand']
  #allocation3 [shape = 'bf16[288,256]{1,0:T(16,128)(2,1)}', space=vmem, size = 0x24000, scoped, tag = 'scratch operand']
  %s0 = inlined_call_operand.hbm [shape: f32[2,32,256], index: 0, kind: input, shape index: {}]
  %s1 = inlined_call_operand.hbm [shape: bf16[32,288], index: 1, kind: input, shape index: {}]
  %s2 = inlined_call_operand.hbm [shape: f32[32,1], index: 2, kind: input, shape index: {}]
  %s3 = inlined_call_operand.hbm [shape: bf16[32,32], index: 3, kind: input, shape index: {}]
  %s4 = inlined_call_operand.hbm [shape: f32[32,1], index: 4, kind: input, shape index: {}]
  %s5 = inlined_call_operand.hbm [shape: f32[2,32,256], index: 5, kind: output, shape index: {}]
  %s6 = sld [smem:[#allocation0]]
  $region73: #{block_forward_nchw.1} parent=0
    _
  %s8 = ssub.s32 1, %s6
  %s9 = scalar_select 0, %s8, %s6
  $region1: #{block_forward_nchw.1} parent=0
    #allocation4 [shape = 'u8[65536]{0}', space=vmem, size = 0x10000, scoped, tag = 'input window, operand 0']
    #allocation5 [shape = 's32[2]{0}', space=sflag, size = 0x8, scoped, tag = 'scoped memory for block_forward_nchw.1']
    #allocation6 [shape = 's32[2]{0}', space=sflag, size = 0x8, scoped, tag = 'scoped memory for block_forward_nchw.1']
    #allocation7 [shape = 'u8[24576]{0}', space=vmem, size = 0x6000, scoped, tag = 'input window, operand 1, single buffered']
    #allocation8 [shape = 's32[1]{0}', space=sflag, size = 0x4, scoped, tag = 'scoped memory for block_forward_nchw.1']
    #allocation9 [shape = 'u8[16384]{0}', space=vmem, size = 0x4000, scoped, tag = 'input window, operand 2, single buffered']
    #allocation10 [shape = 'u8[8192]{0}', space=vmem, size = 0x2000, scoped, tag = 'input window, operand 3, single buffered']
    #allocation11 [shape = 's32[1]{0}', space=sflag, size = 0x4, scoped, tag = 'scoped memory for block_forward_nchw.1']
    #allocation12 [shape = 'u8[16384]{0}', space=vmem, size = 0x4000, scoped, tag = 'input window, operand 4, single buffered']
    #allocation13 [shape = 'u8[65536]{0}', space=vmem, size = 0x10000, scoped, tag = 'output window, operand 0']
    %10 = vsyncpa [#allocation5], 0
    %s11 = scalar_lea.sflag [#allocation5], 1
    %12 = vsyncpa %s11, 0
    %13 = vsyncpa [#allocation8], 0
    %14 = vsyncpa [#allocation11], 0
    %15 = vsyncpa [#allocation6], 0
    %s16 = scalar_lea.sflag [#allocation6], 1
    %17 = vsyncpa %s16, 0
    loop: start=0, step=1, limit=4
    $region2: #{block_forward_nchw.1} parent=1 // loop_pre_header
      _
    $region3: #{block_forward_nchw.1} parent=1 // loop_header
      %s19 = sphi 0, %s23
      %p20 = scmp.ge.s32.totalorder %s19, 4
      %s29 = sphi 0, %s31
      %s32 = sphi 0, %s29
      %s33 = sphi 0, %s32
      %s49 = sphi 0, %s33
      %s53 = sphi 0, %s53
      %s55 = sphi 0, %s53
      %s56 = sphi 0, %s55
      %s70 = sphi 0, %s56
      %s74 = sphi 0, %s74
      %s76 = sphi 0, %s74
      %s77 = sphi 0, %s76
      %s91 = sphi 0, %s77
      %s95 = sphi 0, %s95
      %s97 = sphi 0, %s95
      %s98 = sphi 0, %s97
      %s112 = sphi 0, %s98
      %s116 = sphi 0, %s116
      %s118 = sphi 0, %s116
      %s119 = sphi 0, %s118
      %s133 = sphi 0, %s119
      %s139 = sphi 0, %s141
      %s142 = sphi 0, %s139
      %s143 = sphi 0, %s142
      %s159 = sphi 0, %s143
    $region4: #{block_forward_nchw.1} parent=1 // loop_header_branch
      %22 = sbr.rel (%p20) target = $region8
    $region5: #{block_forward_nchw.1} parent=1 // loop_body
      %s24 = ssub.s32 %s19, 1
      %s25 = ssub.s32 %s19, 2
      %s26 = sadd.s32 %s19, 1
      %s27 = ssub.s32 %s19, %s26
      %p28 = scmp.eq.s32.totalorder %s27, 0
      %s30 = sadd.s32 %s29, 1
      %s31 = scalar_select %p28, %s29, %s30
      %p34 = pneg %p28
      %p35 = scmp.eq.s32.totalorder %s19, 1
      %p36 = por %p34, %p35
      %p37 = scmp.ne.s32.totalorder %s29, %s32
      %p38 = scmp.eq.s32.totalorder %s19, 0
      %p39 = por %p37, %p38
      %p40 = scmp.ne.s32.totalorder %s29, %s32
      %p41 = scmp.eq.s32.totalorder %s24, 1
      %p42 = por %p40, %p41
      %p43 = scmp.ne.s32.totalorder %s32, %s33
      %p44 = scmp.eq.s32.totalorder %s24, 0
      %p45 = por %p43, %p44
      %p46 = scmp.ne.s32.totalorder %s32, %s33
      %p47 = scmp.eq.s32.totalorder %s25, 1
      %p48 = por %p46, %p47
      %p50 = scmp.ne.s32.totalorder %s33, %s49
      %p51 = scmp.eq.s32.totalorder %s25, 0
      %p52 = por %p50, %p51
      %s54 = sadd.s32 %s53, 1
      %p57 = scmp.eq.s32.totalorder %s19, 1
      %p58 = scmp.ne.s32.totalorder %s53, %s55
      %p59 = scmp.eq.s32.totalorder %s19, 0
      %p60 = por %p58, %p59
      %p61 = scmp.ne.s32.totalorder %s53, %s55
      %p62 = scmp.eq.s32.totalorder %s24, 1
      %p63 = por %p61, %p62
      %p64 = scmp.ne.s32.totalorder %s55, %s56
      %p65 = scmp.eq.s32.totalorder %s24, 0
      %p66 = por %p64, %p65
      %p67 = scmp.ne.s32.totalorder %s55, %s56
      %p68 = scmp.eq.s32.totalorder %s25, 1
      %p69 = por %p67, %p68
      %p71 = scmp.ne.s32.totalorder %s56, %s70
      %p72 = scmp.eq.s32.totalorder %s25, 0
      %p73 = por %p71, %p72
      %s75 = sadd.s32 %s74, 1
      %p78 = scmp.eq.s32.totalorder %s19, 1
      %p79 = scmp.ne.s32.totalorder %s74, %s76
      %p80 = scmp.eq.s32.totalorder %s19, 0
      %p81 = por %p79, %p80
      %p82 = scmp.ne.s32.totalorder %s74, %s76
      %p83 = scmp.eq.s32.totalorder %s24, 1
      %p84 = por %p82, %p83
      %p85 = scmp.ne.s32.totalorder %s76, %s77
      %p86 = scmp.eq.s32.totalorder %s24, 0
      %p87 = por %p85, %p86
      %p88 = scmp.ne.s32.totalorder %s76, %s77
      %p89 = scmp.eq.s32.totalorder %s25, 1
      %p90 = por %p88, %p89
      %p92 = scmp.ne.s32.totalorder %s77, %s91
      %p93 = scmp.eq.s32.totalorder %s25, 0
      %p94 = por %p92, %p93
      %s96 = sadd.s32 %s95, 1
      %p99 = scmp.eq.s32.totalorder %s19, 1
      %p100 = scmp.ne.s32.totalorder %s95, %s97
      %p101 = scmp.eq.s32.totalorder %s19, 0
      %p102 = por %p100, %p101
      %p103 = scmp.ne.s32.totalorder %s95, %s97
      %p104 = scmp.eq.s32.totalorder %s24, 1
      %p105 = por %p103, %p104
      %p106 = scmp.ne.s32.totalorder %s97, %s98
      %p107 = scmp.eq.s32.totalorder %s24, 0
      %p108 = por %p106, %p107
      %p109 = scmp.ne.s32.totalorder %s97, %s98
      %p110 = scmp.eq.s32.totalorder %s25, 1
      %p111 = por %p109, %p110
      %p113 = scmp.ne.s32.totalorder %s98, %s112
      %p114 = scmp.eq.s32.totalorder %s25, 0
      %p115 = por %p113, %p114
      %s117 = sadd.s32 %s116, 1
      %p120 = scmp.eq.s32.totalorder %s19, 1
      %p121 = scmp.ne.s32.totalorder %s116, %s118
      %p122 = scmp.eq.s32.totalorder %s19, 0
      %p123 = por %p121, %p122
      %p124 = scmp.ne.s32.totalorder %s116, %s118
      %p125 = scmp.eq.s32.totalorder %s24, 1
      %p126 = por %p124, %p125
      %p127 = scmp.ne.s32.totalorder %s118, %s119
      %p128 = scmp.eq.s32.totalorder %s24, 0
      %p129 = por %p127, %p128
      %p130 = scmp.ne.s32.totalorder %s118, %s119
      %p131 = scmp.eq.s32.totalorder %s25, 1
      %p132 = por %p130, %p131
      %p134 = scmp.ne.s32.totalorder %s119, %s133
      %p135 = scmp.eq.s32.totalorder %s25, 0
      %p136 = por %p134, %p135
      %s137 = ssub.s32 %s19, %s26
      %p138 = scmp.eq.s32.totalorder %s137, 0
      %s140 = sadd.s32 %s139, 1
      %s141 = scalar_select %p138, %s139, %s140
      %p144 = pneg %p138
      %p145 = scmp.eq.s32.totalorder %s19, 1
      %p146 = por %p144, %p145
      %p147 = scmp.ne.s32.totalorder %s139, %s142
      %p148 = scmp.eq.s32.totalorder %s19, 0
      %p149 = por %p147, %p148
      %p150 = scmp.ne.s32.totalorder %s139, %s142
      %p151 = scmp.eq.s32.totalorder %s24, 1
      %p152 = por %p150, %p151
      %p153 = scmp.ne.s32.totalorder %s142, %s143
      %p154 = scmp.eq.s32.totalorder %s24, 0
      %p155 = por %p153, %p154
      %p156 = scmp.ne.s32.totalorder %s142, %s143
      %p157 = scmp.eq.s32.totalorder %s25, 1
      %p158 = por %p156, %p157
      %p160 = scmp.ne.s32.totalorder %s143, %s159
      %p161 = scmp.eq.s32.totalorder %s25, 0
      %p162 = por %p160, %p161
      %p163 = scmp.le.s32.totalorder 1, %s19
      %p164 = scmp.lt.s32.totalorder %s19, 3
      %p165 = pnand %p163, %p164
      %p166 = pneg %p165
      // Predicated region
      $region9: #{block_forward_nchw.1} parent=5 // pred_check
        _
      $region10: #{block_forward_nchw.1} parent=5 // pred_check_branch
        %168 = sbr.rel (%p165) target = $region12
      $region11: #{block_forward_nchw.1} parent=5 // pred_region
        %s169 = ssub.s32 %s19, 1
        // Predicated region
        $region13: #{block_forward_nchw.1} parent=11 // pred_check
          %p170 = pneg %p66
        $region14: #{block_forward_nchw.1} parent=11 // pred_check_branch
          %172 = sbr.rel (%p170) target = $region16
        $region15: #{block_forward_nchw.1} parent=11 // pred_region
          %s174 = ssub.s32 768, 768
          %175 = vsyncadd [#allocation8], %s174
          %s176 = sshll.u32 [#allocation7], 4
          %s177 = int_to_ptr.vmem [resolvable:$true] %s176
          %182 = dma.hbm_to_vmem [thread:$0]  %s1, 768, %s177, [#allocation8], 192, 192, 12
        $region16: #{block_forward_nchw.1} parent=11 // pred_fallthru
          _
        // Predicated region
        $region17: #{block_forward_nchw.1} parent=11 // pred_check
          %p183 = pneg %p87
        $region18: #{block_forward_nchw.1} parent=11 // pred_check_branch
          %185 = sbr.rel (%p183) target = $region20
        $region19: #{block_forward_nchw.1} parent=11 // pred_region
          %s187 = ssub.s32 512, 512
          %188 = vsyncadd [#allocation8], %s187
          %s189 = sshll.u32 [#allocation9], 4
          %s190 = int_to_ptr.vmem [resolvable:$true] %s189
          %195 = dma.hbm_to_vmem [thread:$0]  %s2, 512, %s190, [#allocation8], 128, 128, 8
        $region20: #{block_forward_nchw.1} parent=11 // pred_fallthru
          _
        // Predicated region
        $region21: #{block_forward_nchw.1} parent=11 // pred_check
          %p196 = pneg %p108
        $region22: #{block_forward_nchw.1} parent=11 // pred_check_branch
          %198 = sbr.rel (%p196) target = $region24
        $region23: #{block_forward_nchw.1} parent=11 // pred_region
          %s200 = ssub.s32 256, 256
          %201 = vsyncadd [#allocation11], %s200
          %s202 = sshll.u32 [#allocation10], 4
          %s203 = int_to_ptr.vmem [resolvable:$true] %s202
          %208 = dma.hbm_to_vmem [thread:$0]  %s3, 256, %s203, [#allocation11], 64, 64, 4
        $region24: #{block_forward_nchw.1} parent=11 // pred_fallthru
          _
        // Predicated region
        $region25: #{block_forward_nchw.1} parent=11 // pred_check
          %p209 = pneg %p129
        $region26: #{block_forward_nchw.1} parent=11 // pred_check_branch
          %211 = sbr.rel (%p209) target = $region28
        $region27: #{block_forward_nchw.1} parent=11 // pred_region
          %s213 = ssub.s32 512, 512
          %214 = vsyncadd [#allocation11], %s213
          %s215 = sshll.u32 [#allocation12], 4
          %s216 = int_to_ptr.vmem [resolvable:$true] %s215
          %221 = dma.hbm_to_vmem [thread:$0]  %s4, 512, %s216, [#allocation11], 128, 128, 8
        $region28: #{block_forward_nchw.1} parent=11 // pred_fallthru
          _
      $region12: #{block_forward_nchw.1} parent=5 // pred_fallthru
        _
      %p222 = scmp.lt.s32.totalorder %s19, 2
      // Predicated region
      $region29: #{block_forward_nchw.1} parent=5 // pred_check
        %p223 = pneg %p222
      $region30: #{block_forward_nchw.1} parent=5 // pred_check_branch
        %225 = sbr.rel (%p223) target = $region32
      $region31: #{block_forward_nchw.1} parent=5 // pred_region
        // Predicated region
        $region33: #{block_forward_nchw.1} parent=31 // pred_check
          %p226 = pneg %p39
        $region34: #{block_forward_nchw.1} parent=31 // pred_check_branch
          %228 = sbr.rel (%p226) target = $region36
        $region35: #{block_forward_nchw.1} parent=31 // pred_region
          %s229 = sand.u32 %s29, 1
          %s230 = scalar_lea.sflag [#allocation5], %s229
          %s231 = sand.u32 %s29, 1
          %s232 = smul.addr %s231, 64
          %s233 = scalar_lea.vmem [#allocation4], %s232
          %s235 = ssub.s32 1024, 1024
          %236 = vsyncadd %s230, %s235
          %s237 = smul.addr %s19, 8
          %s238 = smul.addr %s237, 128
          %s239 = scalar_lea.hbm %s0, %s238
          %s240 = sshll.u32 %s233, 4
          %s241 = int_to_ptr.vmem [resolvable:$true] %s240
          %246 = dma.hbm_to_vmem [thread:$0]  %s239, 1024, %s241, %s230, 256, 256, 16
        $region36: #{block_forward_nchw.1} parent=31 // pred_fallthru
          _
      $region32: #{block_forward_nchw.1} parent=5 // pred_fallthru
        _
      %p247 = scmp.le.s32.totalorder 1, %s19
      %p248 = scmp.lt.s32.totalorder %s19, 3
      %p249 = pnand %p247, %p248
      %p250 = pneg %p249
      // Predicated region
      $region37: #{block_forward_nchw.1} parent=5 // pred_check
        _
      $region38: #{block_forward_nchw.1} parent=5 // pred_check_branch
        %252 = sbr.rel (%p249) target = $region40
      $region39: #{block_forward_nchw.1} parent=5 // pred_region
        %s253 = ssub.s32 %s19, 1
        %s254 = sand.u32 %s32, 1
        %s255 = scalar_lea.sflag [#allocation5], %s254
        %s256 = sand.u32 %s32, 1
        %s257 = smul.addr %s256, 64
        %s258 = scalar_lea.vmem [#allocation4], %s257
        // Predicated region
        $region41: #{block_forward_nchw.1} parent=39 // pred_check
          %p259 = pneg %p45
        $region42: #{block_forward_nchw.1} parent=39 // pred_check_branch
          %261 = sbr.rel (%p259) target = $region44
        $region43: #{block_forward_nchw.1} parent=39 // pred_region
          %262 = dma.done %s255, 1024
        $region44: #{block_forward_nchw.1} parent=39 // pred_fallthru
          _
        // Predicated region
        $region45: #{block_forward_nchw.1} parent=39 // pred_check
          %p263 = pneg %p66
        $region46: #{block_forward_nchw.1} parent=39 // pred_check_branch
          %265 = sbr.rel (%p263) target = $region48
        $region47: #{block_forward_nchw.1} parent=39 // pred_region
          %266 = dma.done [#allocation8], 768
        $region48: #{block_forward_nchw.1} parent=39 // pred_fallthru
          _
        // Predicated region
        $region49: #{block_forward_nchw.1} parent=39 // pred_check
          %p267 = pneg %p87
        $region50: #{block_forward_nchw.1} parent=39 // pred_check_branch
          %269 = sbr.rel (%p267) target = $region52
        $region51: #{block_forward_nchw.1} parent=39 // pred_region
          %270 = dma.done [#allocation8], 512
        $region52: #{block_forward_nchw.1} parent=39 // pred_fallthru
          _
        // Predicated region
        $region53: #{block_forward_nchw.1} parent=39 // pred_check
          %p271 = pneg %p108
        $region54: #{block_forward_nchw.1} parent=39 // pred_check_branch
          %273 = sbr.rel (%p271) target = $region56
        $region55: #{block_forward_nchw.1} parent=39 // pred_region
          %274 = dma.done [#allocation11], 256
        $region56: #{block_forward_nchw.1} parent=39 // pred_fallthru
          _
        // Predicated region
        $region57: #{block_forward_nchw.1} parent=39 // pred_check
          %p275 = pneg %p129
        $region58: #{block_forward_nchw.1} parent=39 // pred_check_branch
          %277 = sbr.rel (%p275) target = $region60
        $region59: #{block_forward_nchw.1} parent=39 // pred_region
          %278 = dma.done [#allocation11], 512
        $region60: #{block_forward_nchw.1} parent=39 // pred_fallthru
          _
        %s279 = sand.u32 %s32, 1
        %s280 = scalar_lea.sflag [#allocation5], %s279
        %s281 = sand.u32 %s32, 1
        %s282 = smul.addr %s281, 64
        %s283 = scalar_lea.vmem [#allocation4], %s282
        %p284 = pneg %p45
        %p285 = pneg %p42
        %p286 = pneg %p66
        %p287 = pneg %p63
        %p288 = pneg %p87
        %p289 = pneg %p84
        %p290 = pneg %p108
        %p291 = pneg %p105
        %p292 = pneg %p129
        %p293 = pneg %p126
        %p294 = pneg %p155
        %p295 = pneg %p152
        %s296 = sand.u32 %s142, 1
        %s297 = scalar_lea.sflag [#allocation6], %s296
        %s298 = sand.u32 %s142, 1
        %s299 = smul.addr %s298, 64
        %s300 = scalar_lea.vmem [#allocation13], %s299
        %v302 = vlaneseq
        %v303 = vand.u32 %v302, 127
        %v304 = vadd.s32 %v303, 128
        %vm305 = vcmp.lt.s32.totalorder %v303, 0
        %v306 = vsub.s32 0, %v303
        %v307 = vsel %vm305, %v306, %v303
        %v308 = vshrl.u32 %v307, 4
        %v309 = vand.u32 %v307, 15
        %v310 = vsub.s32 0, %v309
        %v311 = vsel %vm305, %v310, %v309
        %vm312 = vcmp.lt.s32.totalorder %v304, 0
        %v313 = vsub.s32 0, %v304
        %v314 = vsel %vm312, %v313, %v304
        %v315 = vshrl.u32 %v314, 4
        %v316 = vand.u32 %v314, 15
        %v317 = vsub.s32 0, %v316
        %v318 = vsel %vm312, %v317, %v316
        %vm319 = vcmp.ne.s32.totalorder %v311, 0
        %vm320 = vcmp.ne.s32.totalorder %v318, 0
        %vm321 = vcmp.lt.s32.totalorder %v311, 0
        %vm322 = vcmp.lt.s32.totalorder %v318, 0
        %vm323 = vmand %vm321, %vm319
        %vm324 = vmand %vm322, %vm320
        %v325 = vadd.s32 %v311, 16
        %v326 = vadd.s32 %v318, 16
        %v327 = vsel %vm323, %v325, %v311
        %v328 = vsel %vm324, %v326, %v318
        %vm329 = vcmask 1048440
        %330 = vst.msk [vmem:[#allocation2] sm:$0xff] %vm329, 0.0
        %331 = vst.msk [vmem:[#allocation2 + $0x20] sm:$0xff] %vm329, 0.0
        %332 = vst.msk [vmem:[#allocation2 + $0x40] sm:$0xff] %vm329, 0.0
        %333 = vst.msk [vmem:[#allocation2 + $0x60] sm:$0xff] %vm329, 0.0
        %vm334 = vcmask 138240
        %335 = vst.msk [vmem:[#allocation2 + $0x18] sm:$0xff] %vm334, 0.0
        %336 = vst.msk [vmem:[#allocation2 + $0x38] sm:$0xff] %vm334, 0.0
        %337 = vst.msk [vmem:[#allocation2 + $0x58] sm:$0xff] %vm334, 0.0
        %338 = vst.msk [vmem:[#allocation2 + $0x78] sm:$0xff] %vm334, 0.0
        %v339 = vld [vmem:[%s258] sm:$0xff]
        %v340 = vld [vmem:[%s258 + $0x8] sm:$0xff]
        %v341 = vld [vmem:[%s258 + $0x10] sm:$0xff]
        %v342 = vld [vmem:[%s258 + $0x18] sm:$0xff]
        %v343 = vld [vmem:[%s258 + $0x20] sm:$0xff]
        %v344 = vld [vmem:[%s258 + $0x28] sm:$0xff]
        %v345 = vld [vmem:[%s258 + $0x30] sm:$0xff]
        %v346 = vld [vmem:[%s258 + $0x38] sm:$0xff]
        %347 = vst [vmem:[#allocation2 + $0x8] sm:$0xff] %v339
        %348 = vst [vmem:[#allocation2 + $0x10] sm:$0xff] %v340
        %349 = vst [vmem:[#allocation2 + $0x28] sm:$0xff] %v341
        %350 = vst [vmem:[#allocation2 + $0x30] sm:$0xff] %v342
        %351 = vst [vmem:[#allocation2 + $0x48] sm:$0xff] %v343
        %352 = vst [vmem:[#allocation2 + $0x50] sm:$0xff] %v344
        %353 = vst [vmem:[#allocation2 + $0x68] sm:$0xff] %v345
        %354 = vst [vmem:[#allocation2 + $0x70] sm:$0xff] %v346
        %v355 = vld [vmem:[#allocation2] sm:$0xff]
        %v356 = vld [vmem:[#allocation2 + $0x8] sm:$0xff]
        %v357 = vld [vmem:[#allocation2 + $0x10] sm:$0xff]
        %v358 = vld [vmem:[#allocation2 + $0x20] sm:$0xff]
        %v359 = vld [vmem:[#allocation2 + $0x28] sm:$0xff]
        %v360 = vld [vmem:[#allocation2 + $0x30] sm:$0xff]
        %v361 = vld [vmem:[#allocation2 + $0x40] sm:$0xff]
        %v362 = vld [vmem:[#allocation2 + $0x48] sm:$0xff]
        %v363 = vld [vmem:[#allocation2 + $0x50] sm:$0xff]
        %v364 = vld [vmem:[#allocation2 + $0x60] sm:$0xff]
        %v365 = vld [vmem:[#allocation2 + $0x68] sm:$0xff]
        %v366 = vld [vmem:[#allocation2 + $0x70] sm:$0xff]
        %vm367 = vcmp.ge.s32.totalorder %v327, 1
        %vm368 = vcmp.ge.s32.totalorder %v328, 1
        %381 = vrot.lane.b32.xlu0 %v355, 17
        %v382 = vpop.permute.xlu0 %381
        %383 = vrot.lane.b32.xlu0 %v356, 17
        %v384 = vpop.permute.xlu0 %383
        %385 = vrot.lane.b32.xlu0 %v357, 17
        %v386 = vpop.permute.xlu0 %385
        %387 = vrot.lane.b32.xlu0 %v358, 17
        %v388 = vpop.permute.xlu0 %387
        %389 = vrot.lane.b32.xlu0 %v359, 17
        %v390 = vpop.permute.xlu0 %389
        %391 = vrot.lane.b32.xlu0 %v360, 17
        %v392 = vpop.permute.xlu0 %391
        %393 = vrot.lane.b32.xlu0 %v361, 17
        %v394 = vpop.permute.xlu0 %393
        %395 = vrot.lane.b32.xlu0 %v362, 17
        %v396 = vpop.permute.xlu0 %395
        %397 = vrot.lane.b32.xlu0 %v363, 17
        %v398 = vpop.permute.xlu0 %397
        %399 = vrot.lane.b32.xlu0 %v364, 17
        %v400 = vpop.permute.xlu0 %399
        %401 = vrot.lane.b32.xlu0 %v365, 17
        %v402 = vpop.permute.xlu0 %401
        %403 = vrot.lane.b32.xlu0 %v366, 17
        %v404 = vpop.permute.xlu0 %403
        %v405 = vsel %vm334, %v382, %v384
        %v406 = vsel %vm334, %v384, %v386
        %v407 = vsel %vm334, %v388, %v390
        %v408 = vsel %vm334, %v390, %v392
        %v409 = vsel %vm334, %v394, %v396
        %v410 = vsel %vm334, %v396, %v398
        %v411 = vsel %vm334, %v400, %v402
        %v412 = vsel %vm334, %v402, %v404
        %v421 = vsel %vm367, %v405, 0.0
        %v422 = vsel %vm368, %v406, 0.0
        %v423 = vsel %vm367, %v407, 0.0
        %v424 = vsel %vm368, %v408, 0.0
        %v425 = vsel %vm367, %v409, 0.0
        %v426 = vsel %vm368, %v410, 0.0
        %v427 = vsel %vm367, %v411, 0.0
        %v428 = vsel %vm368, %v412, 0.0
        %v429 = vpack.c.bf16 %v423, %v421
        %v430 = vpack.c.bf16 %v424, %v422
        %v431 = vpack.c.bf16 %v427, %v425
        %v432 = vpack.c.bf16 %v428, %v426
        %433 = vst [vmem:[#allocation3] sm:$0xff] %v429
        %434 = vst [vmem:[#allocation3 + $0x8] sm:$0xff] %v430
        %435 = vst [vmem:[#allocation3 + $0x10] sm:$0xff] %v431
        %436 = vst [vmem:[#allocation3 + $0x18] sm:$0xff] %v432
        %v437 = vld [vmem:[#allocation2] sm:$0xff]
        %v438 = vld [vmem:[#allocation2 + $0x8] sm:$0xff]
        %v439 = vld [vmem:[#allocation2 + $0x10] sm:$0xff]
        %v440 = vld [vmem:[#allocation2 + $0x20] sm:$0xff]
        %v441 = vld [vmem:[#allocation2 + $0x28] sm:$0xff]
        %v442 = vld [vmem:[#allocation2 + $0x30] sm:$0xff]
        %v443 = vld [vmem:[#allocation2 + $0x40] sm:$0xff]
        %v444 = vld [vmem:[#allocation2 + $0x48] sm:$0xff]
        %v445 = vld [vmem:[#allocation2 + $0x50] sm:$0xff]
        %v446 = vld [vmem:[#allocation2 + $0x60] sm:$0xff]
        %v447 = vld [vmem:[#allocation2 + $0x68] sm:$0xff]
        %v448 = vld [vmem:[#allocation2 + $0x70] sm:$0xff]
        %v449 = vpack.c.bf16 %v440, %v437
        %v450 = vpack.c.bf16 %v441, %v438
        %v451 = vpack.c.bf16 %v442, %v439
        %v452 = vpack.c.bf16 %v446, %v443
        %v453 = vpack.c.bf16 %v447, %v444
        %v454 = vpack.c.bf16 %v448, %v445
        %461 = vrot.lane.b32.xlu0 %v449, 16
        %v462 = vpop.permute.xlu0 %461
        %463 = vrot.lane.b32.xlu0 %v450, 16
        %v464 = vpop.permute.xlu0 %463
        %465 = vrot.lane.b32.xlu0 %v451, 16
        %v466 = vpop.permute.xlu0 %465
        %467 = vrot.lane.b32.xlu0 %v452, 16
        %v468 = vpop.permute.xlu0 %467
        %469 = vrot.lane.b32.xlu0 %v453, 16
        %v470 = vpop.permute.xlu0 %469
        %471 = vrot.lane.b32.xlu0 %v454, 16
        %v472 = vpop.permute.xlu0 %471
        %vm473 = vcmask 130048
        %v474 = vsel %vm473, %v462, %v464
        %v475 = vsel %vm473, %v464, %v466
        %v476 = vsel %vm473, %v468, %v470
        %v477 = vsel %vm473, %v470, %v472
        %482 = vst [vmem:[#allocation3 + $0x20] sm:$0xff] %v474
        %483 = vst [vmem:[#allocation3 + $0x28] sm:$0xff] %v475
        %484 = vst [vmem:[#allocation3 + $0x30] sm:$0xff] %v476
        %485 = vst [vmem:[#allocation3 + $0x38] sm:$0xff] %v477
        %v486 = vld [vmem:[#allocation2] sm:$0xff]
        %v487 = vld [vmem:[#allocation2 + $0x8] sm:$0xff]
        %v488 = vld [vmem:[#allocation2 + $0x10] sm:$0xff]
        %v489 = vld [vmem:[#allocation2 + $0x20] sm:$0xff]
        %v490 = vld [vmem:[#allocation2 + $0x28] sm:$0xff]
        %v491 = vld [vmem:[#allocation2 + $0x30] sm:$0xff]
        %v492 = vld [vmem:[#allocation2 + $0x40] sm:$0xff]
        %v493 = vld [vmem:[#allocation2 + $0x48] sm:$0xff]
        %v494 = vld [vmem:[#allocation2 + $0x50] sm:$0xff]
        %v495 = vld [vmem:[#allocation2 + $0x60] sm:$0xff]
        %v496 = vld [vmem:[#allocation2 + $0x68] sm:$0xff]
        %v497 = vld [vmem:[#allocation2 + $0x70] sm:$0xff]
        %vm498 = vcmp.lt.s32.totalorder %v327, 15
        %vm499 = vcmp.lt.s32.totalorder %v328, 15
        %512 = vrot.lane.b32.xlu0 %v486, 15
        %v513 = vpop.permute.xlu0 %512
        %514 = vrot.lane.b32.xlu0 %v487, 15
        %v515 = vpop.permute.xlu0 %514
        %516 = vrot.lane.b32.xlu0 %v488, 15
        %v517 = vpop.permute.xlu0 %516
        %518 = vrot.lane.b32.xlu0 %v489, 15
        %v519 = vpop.permute.xlu0 %518
        %520 = vrot.lane.b32.xlu0 %v490, 15
        %v521 = vpop.permute.xlu0 %520
        %522 = vrot.lane.b32.xlu0 %v491, 15
        %v523 = vpop.permute.xlu0 %522
        %524 = vrot.lane.b32.xlu0 %v492, 15
        %v525 = vpop.permute.xlu0 %524
        %526 = vrot.lane.b32.xlu0 %v493, 15
        %v527 = vpop.permute.xlu0 %526
        %528 = vrot.lane.b32.xlu0 %v494, 15
        %v529 = vpop.permute.xlu0 %528
        %530 = vrot.lane.b32.xlu0 %v495, 15
        %v531 = vpop.permute.xlu0 %530
        %532 = vrot.lane.b32.xlu0 %v496, 15
        %v533 = vpop.permute.xlu0 %532
        %534 = vrot.lane.b32.xlu0 %v497, 15
        %v535 = vpop.permute.xlu0 %534
        %vm536 = vcmask 121856
        %v537 = vsel %vm536, %v513, %v515
        %v538 = vsel %vm536, %v515, %v517
        %v539 = vsel %vm536, %v519, %v521
        %v540 = vsel %vm536, %v521, %v523
        %v541 = vsel %vm536, %v525, %v527
        %v542 = vsel %vm536, %v527, %v529
        %v543 = vsel %vm536, %v531, %v533
        %v544 = vsel %vm536, %v533, %v535
        %v553 = vsel %vm498, %v537, 0.0
        %v554 = vsel %vm499, %v538, 0.0
        %v555 = vsel %vm498, %v539, 0.0
        %v556 = vsel %vm499, %v540, 0.0
        %v557 = vsel %vm498, %v541, 0.0
        %v558 = vsel %vm499, %v542, 0.0
        %v559 = vsel %vm498, %v543, 0.0
        %v560 = vsel %vm499, %v544, 0.0
        %v561 = vpack.c.bf16 %v555, %v553
        %v562 = vpack.c.bf16 %v556, %v554
        %v563 = vpack.c.bf16 %v559, %v557
        %v564 = vpack.c.bf16 %v560, %v558
        %565 = vst [vmem:[#allocation3 + $0x40] sm:$0xff] %v561
        %566 = vst [vmem:[#allocation3 + $0x48] sm:$0xff] %v562
        %567 = vst [vmem:[#allocation3 + $0x50] sm:$0xff] %v563
        %568 = vst [vmem:[#allocation3 + $0x58] sm:$0xff] %v564
        %v569 = vld [vmem:[#allocation2] sm:$0xff]
        %v570 = vld [vmem:[#allocation2 + $0x8] sm:$0xff]
        %v571 = vld [vmem:[#allocation2 + $0x10] sm:$0xff]
        %v572 = vld [vmem:[#allocation2 + $0x20] sm:$0xff]
        %v573 = vld [vmem:[#allocation2 + $0x28] sm:$0xff]
        %v574 = vld [vmem:[#allocation2 + $0x30] sm:$0xff]
        %v575 = vld [vmem:[#allocation2 + $0x40] sm:$0xff]
        %v576 = vld [vmem:[#allocation2 + $0x48] sm:$0xff]
        %v577 = vld [vmem:[#allocation2 + $0x50] sm:$0xff]
        %v578 = vld [vmem:[#allocation2 + $0x60] sm:$0xff]
        %v579 = vld [vmem:[#allocation2 + $0x68] sm:$0xff]
        %v580 = vld [vmem:[#allocation2 + $0x70] sm:$0xff]
        %593 = vrot.lane.b32.xlu0 %v569, 1
        %v594 = vpop.permute.xlu0 %593
        %595 = vrot.lane.b32.xlu0 %v570, 1
        %v596 = vpop.permute.xlu0 %595
        %597 = vrot.lane.b32.xlu0 %v571, 1
        %v598 = vpop.permute.xlu0 %597
        %599 = vrot.lane.b32.xlu0 %v572, 1
        %v600 = vpop.permute.xlu0 %599
        %601 = vrot.lane.b32.xlu0 %v573, 1
        %v602 = vpop.permute.xlu0 %601
        %603 = vrot.lane.b32.xlu0 %v574, 1
        %v604 = vpop.permute.xlu0 %603
        %605 = vrot.lane.b32.xlu0 %v575, 1
        %v606 = vpop.permute.xlu0 %605
        %607 = vrot.lane.b32.xlu0 %v576, 1
        %v608 = vpop.permute.xlu0 %607
        %609 = vrot.lane.b32.xlu0 %v577, 1
        %v610 = vpop.permute.xlu0 %609
        %611 = vrot.lane.b32.xlu0 %v578, 1
        %v612 = vpop.permute.xlu0 %611
        %613 = vrot.lane.b32.xlu0 %v579, 1
        %v614 = vpop.permute.xlu0 %613
        %615 = vrot.lane.b32.xlu0 %v580, 1
        %v616 = vpop.permute.xlu0 %615
        %vm617 = vcmask 7168
        %v618 = vsel %vm617, %v594, %v596
        %v619 = vsel %vm617, %v596, %v598
        %v620 = vsel %vm617, %v600, %v602
        %v621 = vsel %vm617, %v602, %v604
        %v622 = vsel %vm617, %v606, %v608
        %v623 = vsel %vm617, %v608, %v610
        %v624 = vsel %vm617, %v612, %v614
        %v625 = vsel %vm617, %v614, %v616
        %v634 = vsel %vm367, %v618, 0.0
        %v635 = vsel %vm368, %v619, 0.0
        %v636 = vsel %vm367, %v620, 0.0
        %v637 = vsel %vm368, %v621, 0.0
        %v638 = vsel %vm367, %v622, 0.0
        %v639 = vsel %vm368, %v623, 0.0
        %v640 = vsel %vm367, %v624, 0.0
        %v641 = vsel %vm368, %v625, 0.0
        %v642 = vpack.c.bf16 %v636, %v634
        %v643 = vpack.c.bf16 %v637, %v635
        %v644 = vpack.c.bf16 %v640, %v638
        %v645 = vpack.c.bf16 %v641, %v639
        %646 = vst [vmem:[#allocation3 + $0x60] sm:$0xff] %v642
        %647 = vst [vmem:[#allocation3 + $0x68] sm:$0xff] %v643
        %648 = vst [vmem:[#allocation3 + $0x70] sm:$0xff] %v644
        %649 = vst [vmem:[#allocation3 + $0x78] sm:$0xff] %v645
        %v650 = vld [vmem:[#allocation2 + $0x8] sm:$0xff]
        %v651 = vld [vmem:[#allocation2 + $0x10] sm:$0xff]
        %v652 = vld [vmem:[#allocation2 + $0x28] sm:$0xff]
        %v653 = vld [vmem:[#allocation2 + $0x30] sm:$0xff]
        %v654 = vld [vmem:[#allocation2 + $0x48] sm:$0xff]
        %v655 = vld [vmem:[#allocation2 + $0x50] sm:$0xff]
        %v656 = vld [vmem:[#allocation2 + $0x68] sm:$0xff]
        %v657 = vld [vmem:[#allocation2 + $0x70] sm:$0xff]
        %v658 = vpack.c.bf16 %v652, %v650
        %v659 = vpack.c.bf16 %v653, %v651
        %v660 = vpack.c.bf16 %v656, %v654
        %v661 = vpack.c.bf16 %v657, %v655
        %662 = vst [vmem:[#allocation3 + $0x80] sm:$0xff] %v658
        %663 = vst [vmem:[#allocation3 + $0x88] sm:$0xff] %v659
        %664 = vst [vmem:[#allocation3 + $0x90] sm:$0xff] %v660
        %665 = vst [vmem:[#allocation3 + $0x98] sm:$0xff] %v661
        %v666 = vld [vmem:[#allocation2 + $0x8] sm:$0xff]
        %v667 = vld [vmem:[#allocation2 + $0x10] sm:$0xff]
        %v668 = vld [vmem:[#allocation2 + $0x18] sm:$0xff]
        %v669 = vld [vmem:[#allocation2 + $0x28] sm:$0xff]
        %v670 = vld [vmem:[#allocation2 + $0x30] sm:$0xff]
        %v671 = vld [vmem:[#allocation2 + $0x38] sm:$0xff]
        %v672 = vld [vmem:[#allocation2 + $0x48] sm:$0xff]
        %v673 = vld [vmem:[#allocation2 + $0x50] sm:$0xff]
        %v674 = vld [vmem:[#allocation2 + $0x58] sm:$0xff]
        %v675 = vld [vmem:[#allocation2 + $0x68] sm:$0xff]
        %v676 = vld [vmem:[#allocation2 + $0x70] sm:$0xff]
        %v677 = vld [vmem:[#allocation2 + $0x78] sm:$0xff]
        %690 = vrot.lane.b32.xlu0 %v666, 127
        %v691 = vpop.permute.xlu0 %690
        %692 = vrot.lane.b32.xlu0 %v667, 127
        %v693 = vpop.permute.xlu0 %692
        %694 = vrot.lane.b32.xlu0 %v668, 127
        %v695 = vpop.permute.xlu0 %694
        %696 = vrot.lane.b32.xlu0 %v669, 127
        %v697 = vpop.permute.xlu0 %696
        %698 = vrot.lane.b32.xlu0 %v670, 127
        %v699 = vpop.permute.xlu0 %698
        %700 = vrot.lane.b32.xlu0 %v671, 127
        %v701 = vpop.permute.xlu0 %700
        %702 = vrot.lane.b32.xlu0 %v672, 127
        %v703 = vpop.permute.xlu0 %702
        %704 = vrot.lane.b32.xlu0 %v673, 127
        %v705 = vpop.permute.xlu0 %704
        %706 = vrot.lane.b32.xlu0 %v674, 127
        %v707 = vpop.permute.xlu0 %706
        %708 = vrot.lane.b32.xlu0 %v675, 127
        %v709 = vpop.permute.xlu0 %708
        %710 = vrot.lane.b32.xlu0 %v676, 127
        %v711 = vpop.permute.xlu0 %710
        %712 = vrot.lane.b32.xlu0 %v677, 127
        %v713 = vpop.permute.xlu0 %712
        %vm714 = vcmask 1039360
        %v715 = vsel %vm714, %v691, %v693
        %v716 = vsel %vm714, %v693, %v695
        %v717 = vsel %vm714, %v697, %v699
        %v718 = vsel %vm714, %v699, %v701
        %v719 = vsel %vm714, %v703, %v705
        %v720 = vsel %vm714, %v705, %v707
        %v721 = vsel %vm714, %v709, %v711
        %v722 = vsel %vm714, %v711, %v713
        %v731 = vsel %vm498, %v715, 0.0
        %v732 = vsel %vm499, %v716, 0.0
        %v733 = vsel %vm498, %v717, 0.0
        %v734 = vsel %vm499, %v718, 0.0
        %v735 = vsel %vm498, %v719, 0.0
        %v736 = vsel %vm499, %v720, 0.0
        %v737 = vsel %vm498, %v721, 0.0
        %v738 = vsel %vm499, %v722, 0.0
        %v739 = vpack.c.bf16 %v733, %v731
        %v740 = vpack.c.bf16 %v734, %v732
        %v741 = vpack.c.bf16 %v737, %v735
        %v742 = vpack.c.bf16 %v738, %v736
        %743 = vst [vmem:[#allocation3 + $0xa0] sm:$0xff] %v739
        %744 = vst [vmem:[#allocation3 + $0xa8] sm:$0xff] %v740
        %745 = vst [vmem:[#allocation3 + $0xb0] sm:$0xff] %v741
        %746 = vst [vmem:[#allocation3 + $0xb8] sm:$0xff] %v742
        %v747 = vld [vmem:[#allocation2 + $0x8] sm:$0xff]
        %v748 = vld [vmem:[#allocation2 + $0x10] sm:$0xff]
        %v749 = vld [vmem:[#allocation2 + $0x18] sm:$0xff]
        %v750 = vld [vmem:[#allocation2 + $0x28] sm:$0xff]
        %v751 = vld [vmem:[#allocation2 + $0x30] sm:$0xff]
        %v752 = vld [vmem:[#allocation2 + $0x38] sm:$0xff]
        %v753 = vld [vmem:[#allocation2 + $0x48] sm:$0xff]
        %v754 = vld [vmem:[#allocation2 + $0x50] sm:$0xff]
        %v755 = vld [vmem:[#allocation2 + $0x58] sm:$0xff]
        %v756 = vld [vmem:[#allocation2 + $0x68] sm:$0xff]
        %v757 = vld [vmem:[#allocation2 + $0x70] sm:$0xff]
        %v758 = vld [vmem:[#allocation2 + $0x78] sm:$0xff]
        %771 = vrot.lane.b32.xlu0 %v747, 113
        %v772 = vpop.permute.xlu0 %771
        %773 = vrot.lane.b32.xlu0 %v748, 113
        %v774 = vpop.permute.xlu0 %773
        %775 = vrot.lane.b32.xlu0 %v749, 113
        %v776 = vpop.permute.xlu0 %775
        %777 = vrot.lane.b32.xlu0 %v750, 113
        %v778 = vpop.permute.xlu0 %777
        %779 = vrot.lane.b32.xlu0 %v751, 113
        %v780 = vpop.permute.xlu0 %779
        %781 = vrot.lane.b32.xlu0 %v752, 113
        %v782 = vpop.permute.xlu0 %781
        %783 = vrot.lane.b32.xlu0 %v753, 113
        %v784 = vpop.permute.xlu0 %783
        %785 = vrot.lane.b32.xlu0 %v754, 113
        %v786 = vpop.permute.xlu0 %785
        %787 = vrot.lane.b32.xlu0 %v755, 113
        %v788 = vpop.permute.xlu0 %787
        %789 = vrot.lane.b32.xlu0 %v756, 113
        %v790 = vpop.permute.xlu0 %789
        %791 = vrot.lane.b32.xlu0 %v757, 113
        %v792 = vpop.permute.xlu0 %791
        %793 = vrot.lane.b32.xlu0 %v758, 113
        %v794 = vpop.permute.xlu0 %793
        %vm795 = vcmask 924672
        %v796 = vsel %vm795, %v772, %v774
        %v797 = vsel %vm795, %v774, %v776
        %v798 = vsel %vm795, %v778, %v780
        %v799 = vsel %vm795, %v780, %v782
        %v800 = vsel %vm795, %v784, %v786
        %v801 = vsel %vm795, %v786, %v788
        %v802 = vsel %vm795, %v790, %v792
        %v803 = vsel %vm795, %v792, %v794
        %v812 = vsel %vm367, %v796, 0.0
        %v813 = vsel %vm368, %v797, 0.0
        %v814 = vsel %vm367, %v798, 0.0
        %v815 = vsel %vm368, %v799, 0.0
        %v816 = vsel %vm367, %v800, 0.0
        %v817 = vsel %vm368, %v801, 0.0
        %v818 = vsel %vm367, %v802, 0.0
        %v819 = vsel %vm368, %v803, 0.0
        %v820 = vpack.c.bf16 %v814, %v812
        %v821 = vpack.c.bf16 %v815, %v813
        %v822 = vpack.c.bf16 %v818, %v816
        %v823 = vpack.c.bf16 %v819, %v817
        %824 = vst [vmem:[#allocation3 + $0xc0] sm:$0xff] %v820
        %825 = vst [vmem:[#allocation3 + $0xc8] sm:$0xff] %v821
        %826 = vst [vmem:[#allocation3 + $0xd0] sm:$0xff] %v822
        %827 = vst [vmem:[#allocation3 + $0xd8] sm:$0xff] %v823
        %v828 = vld [vmem:[#allocation2 + $0x8] sm:$0xff]
        %v829 = vld [vmem:[#allocation2 + $0x10] sm:$0xff]
        %v830 = vld [vmem:[#allocation2 + $0x18] sm:$0xff]
        %v831 = vld [vmem:[#allocation2 + $0x28] sm:$0xff]
        %v832 = vld [vmem:[#allocation2 + $0x30] sm:$0xff]
        %v833 = vld [vmem:[#allocation2 + $0x38] sm:$0xff]
        %v834 = vld [vmem:[#allocation2 + $0x48] sm:$0xff]
        %v835 = vld [vmem:[#allocation2 + $0x50] sm:$0xff]
        %v836 = vld [vmem:[#allocation2 + $0x58] sm:$0xff]
        %v837 = vld [vmem:[#allocation2 + $0x68] sm:$0xff]
        %v838 = vld [vmem:[#allocation2 + $0x70] sm:$0xff]
        %v839 = vld [vmem:[#allocation2 + $0x78] sm:$0xff]
        %v840 = vpack.c.bf16 %v831, %v828
        %v841 = vpack.c.bf16 %v832, %v829
        %v842 = vpack.c.bf16 %v833, %v830
        %v843 = vpack.c.bf16 %v837, %v834
        %v844 = vpack.c.bf16 %v838, %v835
        %v845 = vpack.c.bf16 %v839, %v836
        %852 = vrot.lane.b32.xlu0 %v840, 112
        %v853 = vpop.permute.xlu0 %852
        %854 = vrot.lane.b32.xlu0 %v841, 112
        %v855 = vpop.permute.xlu0 %854
        %856 = vrot.lane.b32.xlu0 %v842, 112
        %v857 = vpop.permute.xlu0 %856
        %858 = vrot.lane.b32.xlu0 %v843, 112
        %v859 = vpop.permute.xlu0 %858
        %860 = vrot.lane.b32.xlu0 %v844, 112
        %v861 = vpop.permute.xlu0 %860
        %862 = vrot.lane.b32.xlu0 %v845, 112
        %v863 = vpop.permute.xlu0 %862
        %vm864 = vcmask 916480
        %v865 = vsel %vm864, %v853, %v855
        %v866 = vsel %vm864, %v855, %v857
        %v867 = vsel %vm864, %v859, %v861
        %v868 = vsel %vm864, %v861, %v863
        %873 = vst [vmem:[#allocation3 + $0xe0] sm:$0xff] %v865
        %874 = vst [vmem:[#allocation3 + $0xe8] sm:$0xff] %v866
        %875 = vst [vmem:[#allocation3 + $0xf0] sm:$0xff] %v867
        %876 = vst [vmem:[#allocation3 + $0xf8] sm:$0xff] %v868
        %v877 = vld [vmem:[#allocation2 + $0x8] sm:$0xff]
        %v878 = vld [vmem:[#allocation2 + $0x10] sm:$0xff]
        %v879 = vld [vmem:[#allocation2 + $0x18] sm:$0xff]
        %v880 = vld [vmem:[#allocation2 + $0x28] sm:$0xff]
        %v881 = vld [vmem:[#allocation2 + $0x30] sm:$0xff]
        %v882 = vld [vmem:[#allocation2 + $0x38] sm:$0xff]
        %v883 = vld [vmem:[#allocation2 + $0x48] sm:$0xff]
        %v884 = vld [vmem:[#allocation2 + $0x50] sm:$0xff]
        %v885 = vld [vmem:[#allocation2 + $0x58] sm:$0xff]
        %v886 = vld [vmem:[#allocation2 + $0x68] sm:$0xff]
        %v887 = vld [vmem:[#allocation2 + $0x70] sm:$0xff]
        %v888 = vld [vmem:[#allocation2 + $0x78] sm:$0xff]
        %901 = vrot.lane.b32.xlu0 %v877, 111
        %v902 = vpop.permute.xlu0 %901
        %903 = vrot.lane.b32.xlu0 %v878, 111
        %v904 = vpop.permute.xlu0 %903
        %905 = vrot.lane.b32.xlu0 %v879, 111
        %v906 = vpop.permute.xlu0 %905
        %907 = vrot.lane.b32.xlu0 %v880, 111
        %v908 = vpop.permute.xlu0 %907
        %909 = vrot.lane.b32.xlu0 %v881, 111
        %v910 = vpop.permute.xlu0 %909
        %911 = vrot.lane.b32.xlu0 %v882, 111
        %v912 = vpop.permute.xlu0 %911
        %913 = vrot.lane.b32.xlu0 %v883, 111
        %v914 = vpop.permute.xlu0 %913
        %915 = vrot.lane.b32.xlu0 %v884, 111
        %v916 = vpop.permute.xlu0 %915
        %917 = vrot.lane.b32.xlu0 %v885, 111
        %v918 = vpop.permute.xlu0 %917
        %919 = vrot.lane.b32.xlu0 %v886, 111
        %v920 = vpop.permute.xlu0 %919
        %921 = vrot.lane.b32.xlu0 %v887, 111
        %v922 = vpop.permute.xlu0 %921
        %923 = vrot.lane.b32.xlu0 %v888, 111
        %v924 = vpop.permute.xlu0 %923
        %vm925 = vcmask 908288
        %v926 = vsel %vm925, %v902, %v904
        %v927 = vsel %vm925, %v904, %v906
        %v928 = vsel %vm925, %v908, %v910
        %v929 = vsel %vm925, %v910, %v912
        %v930 = vsel %vm925, %v914, %v916
        %v931 = vsel %vm925, %v916, %v918
        %v932 = vsel %vm925, %v920, %v922
        %v933 = vsel %vm925, %v922, %v924
        %v942 = vsel %vm498, %v926, 0.0
        %v943 = vsel %vm499, %v927, 0.0
        %v944 = vsel %vm498, %v928, 0.0
        %v945 = vsel %vm499, %v929, 0.0
        %v946 = vsel %vm498, %v930, 0.0
        %v947 = vsel %vm499, %v931, 0.0
        %v948 = vsel %vm498, %v932, 0.0
        %v949 = vsel %vm499, %v933, 0.0
        %v950 = vpack.c.bf16 %v944, %v942
        %v951 = vpack.c.bf16 %v945, %v943
        %v952 = vpack.c.bf16 %v948, %v946
        %v953 = vpack.c.bf16 %v949, %v947
        %954 = vst [vmem:[#allocation3 + $0x100] sm:$0xff] %v950
        %955 = vst [vmem:[#allocation3 + $0x108] sm:$0xff] %v951
        %956 = vst [vmem:[#allocation3 + $0x110] sm:$0xff] %v952
        %957 = vst [vmem:[#allocation3 + $0x118] sm:$0xff] %v953
        %v958 = vld [vmem:[#allocation7] sm:$0xff]
        %v959 = vld [vmem:[#allocation7 + $0x8] sm:$0xf]
        %v960 = vld [vmem:[#allocation7 + $0xc] sm:$0xff]
        %v961 = vld [vmem:[#allocation7 + $0x14] sm:$0xf]
        %v962 = vld [vmem:[#allocation7 + $0x18] sm:$0xff]
        %v963 = vld [vmem:[#allocation7 + $0x20] sm:$0xf]
        %v964 = vld [vmem:[#allocation7 + $0x24] sm:$0xff]
        %v965 = vld [vmem:[#allocation7 + $0x2c] sm:$0xf]
        %v966 = vld [vmem:[#allocation3] sm:$0xff]
        %v967 = vld [vmem:[#allocation3 + $0x8] sm:$0xff]
        %v968 = vld [vmem:[#allocation3 + $0x10] sm:$0xff]
        %v969 = vld [vmem:[#allocation3 + $0x18] sm:$0xff]
        %v970 = vld [vmem:[#allocation3 + $0x20] sm:$0xff]
        %v971 = vld [vmem:[#allocation3 + $0x28] sm:$0xff]
        %v972 = vld [vmem:[#allocation3 + $0x30] sm:$0xff]
        %v973 = vld [vmem:[#allocation3 + $0x38] sm:$0xff]
        %v974 = vld [vmem:[#allocation3 + $0x40] sm:$0xff]
        %v975 = vld [vmem:[#allocation3 + $0x48] sm:$0xff]
        %v976 = vld [vmem:[#allocation3 + $0x50] sm:$0xff]
        %v977 = vld [vmem:[#allocation3 + $0x58] sm:$0xff]
        %v978 = vld [vmem:[#allocation3 + $0x60] sm:$0xff]
        %v979 = vld [vmem:[#allocation3 + $0x68] sm:$0xff]
        %v980 = vld [vmem:[#allocation3 + $0x70] sm:$0xff]
        %v981 = vld [vmem:[#allocation3 + $0x78] sm:$0xff]
        %v982 = vld [vmem:[#allocation3 + $0x80] sm:$0xff]
        %v983 = vld [vmem:[#allocation3 + $0x88] sm:$0xff]
        %v984 = vld [vmem:[#allocation3 + $0x90] sm:$0xff]
        %v985 = vld [vmem:[#allocation3 + $0x98] sm:$0xff]
        %v986 = vld [vmem:[#allocation3 + $0xa0] sm:$0xff]
        %v987 = vld [vmem:[#allocation3 + $0xa8] sm:$0xff]
        %v988 = vld [vmem:[#allocation3 + $0xb0] sm:$0xff]
        %v989 = vld [vmem:[#allocation3 + $0xb8] sm:$0xff]
        %v990 = vld [vmem:[#allocation3 + $0xc0] sm:$0xff]
        %v991 = vld [vmem:[#allocation3 + $0xc8] sm:$0xff]
        %v992 = vld [vmem:[#allocation3 + $0xd0] sm:$0xff]
        %v993 = vld [vmem:[#allocation3 + $0xd8] sm:$0xff]
        %v994 = vld [vmem:[#allocation3 + $0xe0] sm:$0xff]
        %v995 = vld [vmem:[#allocation3 + $0xe8] sm:$0xff]
        %v996 = vld [vmem:[#allocation3 + $0xf0] sm:$0xff]
        %v997 = vld [vmem:[#allocation3 + $0xf8] sm:$0xff]
        %v998 = vld [vmem:[#allocation3 + $0x100] sm:$0xff]
        %v999 = vld [vmem:[#allocation3 + $0x108] sm:$0xff]
        %v1000 = vld [vmem:[#allocation3 + $0x110] sm:$0xff]
        %v1001 = vld [vmem:[#allocation3 + $0x118] sm:$0xff]
        %v1002 = vld [vmem:[#allocation9] sm:$0xff]
        %v1003 = vld [vmem:[#allocation9 + $0x8] sm:$0xff]
        %v1004 = vld [vmem:[#allocation9 + $0x10] sm:$0xff]
        %v1005 = vld [vmem:[#allocation9 + $0x18] sm:$0xff]
        %1007 = vset.pattern.permute.xlu0 0
        %1008 = vperm.xlu0 %1007, %v1002
        %v1009 = vpop.permute.xlu0 %1008
        %1012 = vset.pattern.permute.xlu0 0
        %1013 = vperm.xlu0 %1012, %v1003
        %v1014 = vpop.permute.xlu0 %1013
        %1017 = vset.pattern.permute.xlu0 0
        %1018 = vperm.xlu0 %1017, %v1004
        %v1019 = vpop.permute.xlu0 %1018
        %1022 = vset.pattern.permute.xlu0 0
        %1023 = vperm.xlu0 %1022, %v1005
        %v1024 = vpop.permute.xlu0 %1023
        %v1034 = vunpack.c.l.b16 %v958
        %v1035 = vunpack.c.h.b16 %v958
        %v1036 = vunpack.c.l.b16 %v959
        %v1037 = vunpack.c.l.b16 %v960
        %v1038 = vunpack.c.h.b16 %v960
        %v1039 = vunpack.c.l.b16 %v961
        %v1040 = vunpack.c.l.b16 %v962
        %v1041 = vunpack.c.h.b16 %v962
        %v1042 = vunpack.c.l.b16 %v963
        %v1043 = vunpack.c.l.b16 %v964
        %v1044 = vunpack.c.h.b16 %v964
        %v1045 = vunpack.c.l.b16 %v965
        %v1046 = vpack.c.b16 %v1037, %v1034
        %v1047 = vpack.c.b16 %v1038, %v1035
        %v1048 = vpack.c.b16 %v1039, %v1036
        %v1049 = vpack.c.b16 %v1043, %v1040
        %v1050 = vpack.c.b16 %v1044, %v1041
        %v1051 = vpack.c.b16 %v1045, %v1042
        %vm1056 = vcmask 261120
        %v1058 = vsel %vm1056, %v1048, 0
        %v1061 = vsel %vm1056, %v1051, 0
        %1063 = vmatprep.subr.bf16.mxu0 %v967
        %1064 = vmatpush1.bf16.msra.mxu0 %v966
        %1065 = vmatprep.subr.bf16.mxu0 %v969
        %1066 = vmatpush1.bf16.msra.mxu0 %v968
        %1067 = vmatprep.subr.bf16.mxu0 %v971
        %1068 = vmatpush1.bf16.msra.mxu0 %v970
        %1069 = vmatprep.subr.bf16.mxu0 %v973
        %1070 = vmatpush1.bf16.msra.mxu0 %v972
        %1071 = vmatprep.subr.bf16.mxu0 %v975
        %1072 = vmatpush1.bf16.msra.mxu0 %v974
        %1073 = vmatprep.subr.bf16.mxu0 %v977
        %1074 = vmatpush1.bf16.msra.mxu0 %v976
        %1075 = vmatprep.subr.bf16.mxu0 %v979
        %1076 = vmatpush1.bf16.msra.mxu0 %v978
        %1077 = vmatprep.subr.bf16.mxu0 %v981
        %1078 = vmatpush1.bf16.msra.mxu0 %v980
        %1079 = vmatprep.subr.bf16.mxu0 %v983
        %1080 = vmatpush1.bf16.msra.mxu0 %v982
        %1081 = vmatprep.subr.bf16.mxu0 %v985
        %1082 = vmatpush1.bf16.msra.mxu0 %v984
        %1083 = vmatprep.subr.bf16.mxu0 %v987
        %1084 = vmatpush1.bf16.msra.mxu0 %v986
        %1085 = vmatprep.subr.bf16.mxu0 %v989
        %1086 = vmatpush1.bf16.msra.mxu0 %v988
        %1087 = vmatprep.subr.bf16.mxu0 %v991
        %1088 = vmatpush1.bf16.msra.mxu0 %v990
        %1089 = vmatprep.subr.bf16.mxu0 %v993
        %1090 = vmatpush1.bf16.msra.mxu0 %v992
        %1091 = vmatprep.subr.bf16.mxu0 %v995
        %1092 = vmatpush1.bf16.msra.mxu0 %v994
        %1093 = vmatprep.subr.bf16.mxu0 %v997
        %1094 = vmatpush1.bf16.msra.mxu0 %v996
        %1095 = vmatprep.mubr.bf16.mxu0 %v1047
        %1096 = vmatmul.mubr.bf16.gmra.mrb[0].mxu0 %v1046
        %v1097 = vpop.f32.mrb[0].mxu0
        %v1098 = vadd.f32 %v1009, %v1097
        %v1099 = vpop.f32.mrb[0].mxu0
        %v1100 = vadd.f32 %v1009, %v1099
        %v1101 = vpop.f32.mrb[0].mxu0
        %v1102 = vadd.f32 %v1014, %v1101
        %v1103 = vpop.f32.mrb[0].mxu0
        %v1104 = vadd.f32 %v1014, %v1103
        %1105 = vmatprep.mubr.bf16.mxu0 %v1050
        %1106 = vmatmul.mubr.bf16.gmra.mrb[0].mxu0 %v1049
        %v1107 = vpop.f32.mrb[0].mxu0
        %v1108 = vadd.f32 %v1019, %v1107
        %v1109 = vpop.f32.mrb[0].mxu0
        %v1110 = vadd.f32 %v1019, %v1109
        %v1111 = vpop.f32.mrb[0].mxu0
        %v1112 = vadd.f32 %v1024, %v1111
        %v1113 = vpop.f32.mrb[0].mxu0
        %v1114 = vadd.f32 %v1024, %v1113
        %1115 = vdwg.mxu0
        %1116 = vmatprep.subr.bf16.mxu0 %v999
        %1117 = vmatpush1.bf16.msra.mxu0 %v998
        %1118 = vmatprep.subr.bf16.mxu0 %v1001
        %1119 = vmatpush1.bf16.msra.mxu0 %v1000
        %1120 = vmatprep.subr.bf16.mxu0 0
        %1121 = vmatpush1.bf16.msra.mxu0 0
        %1122 = vmatprep.subr.bf16.mxu0 0
        %1123 = vmatpush1.bf16.msra.mxu0 0
        %1124 = vmatprep.subr.bf16.mxu0 0
        %1125 = vmatpush1.bf16.msra.mxu0 0
        %1126 = vmatprep.subr.bf16.mxu0 0
        %1127 = vmatpush1.bf16.msra.mxu0 0
        %1128 = vmatprep.subr.bf16.mxu0 0
        %1129 = vmatpush1.bf16.msra.mxu0 0
        %1130 = vmatprep.subr.bf16.mxu0 0
        %1131 = vmatpush1.bf16.msra.mxu0 0
        %1132 = vmatprep.subr.bf16.mxu0 0
        %1133 = vmatpush1.bf16.msra.mxu0 0
        %1134 = vmatprep.subr.bf16.mxu0 0
        %1135 = vmatpush1.bf16.msra.mxu0 0
        %1136 = vmatprep.subr.bf16.mxu0 0
        %1137 = vmatpush1.bf16.msra.mxu0 0
        %1138 = vmatprep.subr.bf16.mxu0 0
        %1139 = vmatpush1.bf16.msra.mxu0 0
        %1140 = vmatprep.subr.bf16.mxu0 0
        %1141 = vmatpush1.bf16.msra.mxu0 0
        %1142 = vmatprep.subr.bf16.mxu0 0
        %1143 = vmatpush1.bf16.msra.mxu0 0
        %1144 = vmatprep.subr.bf16.mxu0 0
        %1145 = vmatpush1.bf16.msra.mxu0 0
        %1146 = vmatprep.subr.bf16.mxu0 0
        %1147 = vmatpush1.bf16.msra.mxu0 0
        %1148 = vmatprep.mubr.bf16.mxu0 0
        %1149 = vmatmul.mubr.bf16.gmra.mrb[0].mxu0 %v1058
        %v1150 = vpop.f32.mrb[0].mxu0
        %v1151 = vadd.f32 %v1098, %v1150
        %v1152 = vpop.f32.mrb[0].mxu0
        %v1153 = vadd.f32 %v1100, %v1152
        %v1154 = vpop.f32.mrb[0].mxu0
        %v1155 = vadd.f32 %v1102, %v1154
        %v1156 = vpop.f32.mrb[0].mxu0
        %v1157 = vadd.f32 %v1104, %v1156
        %1158 = vmatprep.mubr.bf16.mxu0 0
        %1159 = vmatmul.mubr.bf16.gmra.mrb[0].mxu0 %v1061
        %v1160 = vpop.f32.mrb[0].mxu0
        %v1161 = vadd.f32 %v1108, %v1160
        %v1162 = vpop.f32.mrb[0].mxu0
        %v1163 = vadd.f32 %v1110, %v1162
        %v1164 = vpop.f32.mrb[0].mxu0
        %v1165 = vadd.f32 %v1112, %v1164
        %v1166 = vpop.f32.mrb[0].mxu0
        %v1167 = vadd.f32 %v1114, %v1166
        %1168 = vdwg.mxu0
        %v1169 = vmax.f32 %v1151, 0.0
        %v1170 = vmax.f32 %v1153, 0.0
        %v1171 = vmax.f32 %v1155, 0.0
        %v1172 = vmax.f32 %v1157, 0.0
        %v1173 = vmax.f32 %v1161, 0.0
        %v1174 = vmax.f32 %v1163, 0.0
        %v1175 = vmax.f32 %v1165, 0.0
        %v1176 = vmax.f32 %v1167, 0.0
        %v1177 = vld [vmem:[#allocation10] sm:$0xf]
        %v1178 = vld [vmem:[#allocation10 + $0x4] sm:$0xf]
        %v1179 = vld [vmem:[#allocation10 + $0x8] sm:$0xf]
        %v1180 = vld [vmem:[#allocation10 + $0xc] sm:$0xf]
        %v1181 = vpack.c.bf16 %v1171, %v1169
        %v1182 = vpack.c.bf16 %v1172, %v1170
        %v1183 = vpack.c.bf16 %v1175, %v1173
        %v1184 = vpack.c.bf16 %v1176, %v1174
        %v1185 = vld [vmem:[#allocation12] sm:$0xff]
        %v1186 = vld [vmem:[#allocation12 + $0x8] sm:$0xff]
        %v1187 = vld [vmem:[#allocation12 + $0x10] sm:$0xff]
        %v1188 = vld [vmem:[#allocation12 + $0x18] sm:$0xff]
        %1190 = vset.pattern.permute.xlu0 0
        %1191 = vperm.xlu0 %1190, %v1185
        %v1192 = vpop.permute.xlu0 %1191
        %1195 = vset.pattern.permute.xlu0 0
        %1196 = vperm.xlu0 %1195, %v1186
        %v1197 = vpop.permute.xlu0 %1196
        %1200 = vset.pattern.permute.xlu0 0
        %1201 = vperm.xlu0 %1200, %v1187
        %v1202 = vpop.permute.xlu0 %1201
        %1205 = vset.pattern.permute.xlu0 0
        %1206 = vperm.xlu0 %1205, %v1188
        %v1207 = vpop.permute.xlu0 %1206
        %v1213 = vunpack.c.l.b16 %v1177
        %v1214 = vunpack.c.l.b16 %v1178
        %v1215 = vunpack.c.l.b16 %v1179
        %v1216 = vunpack.c.l.b16 %v1180
        %v1217 = vpack.c.b16 %v1214, %v1213
        %v1218 = vpack.c.b16 %v1216, %v1215
        %v1220 = vsel %vm1056, %v1217, 0
        %v1223 = vsel %vm1056, %v1218, 0
        %1225 = vmatprep.subr.bf16.mxu0 %v1182
        %1226 = vmatpush1.bf16.msra.mxu0 %v1181
        %1227 = vmatprep.subr.bf16.mxu0 %v1184
        %1228 = vmatpush1.bf16.msra.mxu0 %v1183
        %1229 = vmatprep.subr.bf16.mxu0 0
        %1230 = vmatpush1.bf16.msra.mxu0 0
        %1231 = vmatprep.subr.bf16.mxu0 0
        %1232 = vmatpush1.bf16.msra.mxu0 0
        %1233 = vmatprep.subr.bf16.mxu0 0
        %1234 = vmatpush1.bf16.msra.mxu0 0
        %1235 = vmatprep.subr.bf16.mxu0 0
        %1236 = vmatpush1.bf16.msra.mxu0 0
        %1237 = vmatprep.subr.bf16.mxu0 0
        %1238 = vmatpush1.bf16.msra.mxu0 0
        %1239 = vmatprep.subr.bf16.mxu0 0
        %1240 = vmatpush1.bf16.msra.mxu0 0
        %1241 = vmatprep.subr.bf16.mxu0 0
        %1242 = vmatpush1.bf16.msra.mxu0 0
        %1243 = vmatprep.subr.bf16.mxu0 0
        %1244 = vmatpush1.bf16.msra.mxu0 0
        %1245 = vmatprep.subr.bf16.mxu0 0
        %1246 = vmatpush1.bf16.msra.mxu0 0
        %1247 = vmatprep.subr.bf16.mxu0 0
        %1248 = vmatpush1.bf16.msra.mxu0 0
        %1249 = vmatprep.subr.bf16.mxu0 0
        %1250 = vmatpush1.bf16.msra.mxu0 0
        %1251 = vmatprep.subr.bf16.mxu0 0
        %1252 = vmatpush1.bf16.msra.mxu0 0
        %1253 = vmatprep.subr.bf16.mxu0 0
        %1254 = vmatpush1.bf16.msra.mxu0 0
        %1255 = vmatprep.subr.bf16.mxu0 0
        %1256 = vmatpush1.bf16.msra.mxu0 0
        %1257 = vmatprep.mubr.bf16.mxu0 0
        %1258 = vmatmul.mubr.bf16.gmra.mrb[0].mxu0 %v1220
        %v1259 = vpop.f32.mrb[0].mxu0
        %v1260 = vadd.f32 %v1192, %v1259
        %v1261 = vpop.f32.mrb[0].mxu0
        %v1262 = vadd.f32 %v1192, %v1261
        %v1263 = vpop.f32.mrb[0].mxu0
        %v1264 = vadd.f32 %v1197, %v1263
        %v1265 = vpop.f32.mrb[0].mxu0
        %v1266 = vadd.f32 %v1197, %v1265
        %1267 = vmatprep.mubr.bf16.mxu0 0
        %1268 = vmatmul.mubr.bf16.gmra.mrb[0].mxu0 %v1223
        %v1269 = vpop.f32.mrb[0].mxu0
        %v1270 = vadd.f32 %v1202, %v1269
        %v1271 = vpop.f32.mrb[0].mxu0
        %v1272 = vadd.f32 %v1202, %v1271
        %v1273 = vpop.f32.mrb[0].mxu0
        %v1274 = vadd.f32 %v1207, %v1273
        %v1275 = vpop.f32.mrb[0].mxu0
        %v1276 = vadd.f32 %v1207, %v1275
        %1277 = vdwg.mxu0
        %v1278 = vld [vmem:[%s258] sm:$0xff]
        %v1279 = vld [vmem:[%s258 + $0x8] sm:$0xff]
        %v1280 = vld [vmem:[%s258 + $0x10] sm:$0xff]
        %v1281 = vld [vmem:[%s258 + $0x18] sm:$0xff]
        %v1282 = vld [vmem:[%s258 + $0x20] sm:$0xff]
        %v1283 = vld [vmem:[%s258 + $0x28] sm:$0xff]
        %v1284 = vld [vmem:[%s258 + $0x30] sm:$0xff]
        %v1285 = vld [vmem:[%s258 + $0x38] sm:$0xff]
        %v1286 = vadd.f32 %v1278, %v1260
        %v1287 = vadd.f32 %v1279, %v1262
        %v1288 = vadd.f32 %v1280, %v1264
        %v1289 = vadd.f32 %v1281, %v1266
        %v1290 = vadd.f32 %v1282, %v1270
        %v1291 = vadd.f32 %v1283, %v1272
        %v1292 = vadd.f32 %v1284, %v1274
        %v1293 = vadd.f32 %v1285, %v1276
        %1294 = vst [vmem:[%s300] sm:$0xff] %v1286
        %1295 = vst [vmem:[%s300 + $0x8] sm:$0xff] %v1287
        %1296 = vst [vmem:[%s300 + $0x10] sm:$0xff] %v1288
        %1297 = vst [vmem:[%s300 + $0x18] sm:$0xff] %v1289
        %1298 = vst [vmem:[%s300 + $0x20] sm:$0xff] %v1290
        %1299 = vst [vmem:[%s300 + $0x28] sm:$0xff] %v1291
        %1300 = vst [vmem:[%s300 + $0x30] sm:$0xff] %v1292
        %1301 = vst [vmem:[%s300 + $0x38] sm:$0xff] %v1293
        %s1302 = sand.u32 %s142, 1
        %s1303 = scalar_lea.sflag [#allocation6], %s1302
        %s1304 = sand.u32 %s142, 1
        %s1305 = smul.addr %s1304, 64
        %s1306 = scalar_lea.vmem [#allocation13], %s1305
        // Predicated region
        $region61: #{block_forward_nchw.1} parent=39 // pred_check
          %p1307 = pneg %p152
        $region62: #{block_forward_nchw.1} parent=39 // pred_check_branch
          %1309 = sbr.rel (%p1307) target = $region64
        $region63: #{block_forward_nchw.1} parent=39 // pred_region
          %s1311 = ssub.s32 1024, 1024
          %1312 = vsyncadd %s1303, %s1311
          %s1313 = smul.addr %s24, 8
          %s1314 = smul.addr %s1313, 128
          %s1315 = scalar_lea.hbm %s5, %s1314
          %s1316 = sshll.u32 %s1306, 4
          %s1317 = int_to_ptr.vmem [resolvable:$true] %s1316
          %1322 = dma.vmem_to_hbm [thread:$0]  %s1317, 1024, %s1315, %s1303, 256, 256, 16
        $region64: #{block_forward_nchw.1} parent=39 // pred_fallthru
          _
      $region40: #{block_forward_nchw.1} parent=5 // pred_fallthru
        _
      %p1323 = scmp.le.s32.totalorder 2, %s19
      // Predicated region
      $region65: #{block_forward_nchw.1} parent=5 // pred_check
        %p1324 = pneg %p1323
      $region66: #{block_forward_nchw.1} parent=5 // pred_check_branch
        %1326 = sbr.rel (%p1324) target = $region68
      $region67: #{block_forward_nchw.1} parent=5 // pred_region
        %s1327 = ssub.s32 %s19, 2
        // Predicated region
        $region69: #{block_forward_nchw.1} parent=67 // pred_check
          %p1328 = pneg %p158
        $region70: #{block_forward_nchw.1} parent=67 // pred_check_branch
          %1330 = sbr.rel (%p1328) target = $region72
        $region71: #{block_forward_nchw.1} parent=67 // pred_region
          %s1331 = sand.u32 %s143, 1
          %s1332 = scalar_lea.sflag [#allocation6], %s1331
          %s1333 = sand.u32 %s143, 1
          %s1334 = smul.addr %s1333, 64
          %s1335 = scalar_lea.vmem [#allocation13], %s1334
          %1336 = dma.done %s1332, 1024
        $region72: #{block_forward_nchw.1} parent=67 // pred_fallthru
          _
      $region68: #{block_forward_nchw.1} parent=5 // pred_fallthru
        _
    $region6: #{block_forward_nchw.1} parent=1 // loop_footer
      %s23 = sadd.s32 1, %s19
    $region7: #{block_forward_nchw.1} parent=1 // loop_footer_branch
      %18 = sbr.rel target = $region3
    $region8: #{block_forward_nchw.1} parent=1 // loop_exit
      _
    %1337 = vsyncpa [#allocation5], 1
    %s1338 = scalar_lea.sflag [#allocation5], 1
    %1339 = vsyncpa %s1338, 1
    %1340 = vsyncpa [#allocation8], 1
    %1341 = vsyncpa [#allocation11], 1
    %1342 = vsyncpa [#allocation6], 1
    %s1343 = scalar_lea.sflag [#allocation6], 1
    %1344 = vsyncpa %s1343, 1

</llo_original>
